<compile_context>
chip_gen: v7x
topology: tpu7x:2x2x1
jax: 0.10.0
libtpu: 0.0.40
codegen_flags: <defaults>
</compile_context>

<pallas_src>
import jax
import jax.numpy as jnp
from jax import lax
from jax.experimental import pallas as pl
from jax.experimental.pallas import tpu as pltpu

BN_EPS = 1e-5
LRELU_SLOPE = 0.01  # F.leaky_relu default negative_slope


# ----------------------------------------------------------------------------- helpers
def _device_kind():
    try:
        return jax.devices()[0].device_kind.lower()
    except Exception:
        return ""


def _default_apply_dtype():
    """bf16 BN-apply on chips with bf16 VPU (v6e/v7x); f32 on v5e and older."""
    kind = _device_kind()
    if any(tag in kind for tag in ("v2", "v3", "v4", "v5")):
        return jnp.float32
    return jnp.bfloat16


def _compiler_params():
    kind = _device_kind()
    if "7" in kind:                      # v7x: 64 MiB physical VMEM
        vmem = 40 << 20
    elif "v6" in kind or "v5" in kind:   # 128 MiB physical VMEM
        vmem = 96 << 20
    else:
        vmem = None                      # leave default scoped limit
    return pltpu.CompilerParams(dimension_semantics=("parallel",),
                                vmem_limit_bytes=vmem)


# ----------------------------------------------------------------------------- kernels
def _mm_stats_kernel(x_ref, w_ref, h_ref, st_ref):
    """Layer 1: h = x @ W (bf16 MXU, f32 acc); per-tile partial sum / sum-of-squares.

    Padded (zero) input rows contribute zero to both partials (no pre-BN bias), so the
    statistics stay exact without masking.
    """
    h = jnp.dot(x_ref[...], w_ref[...], preferred_element_type=jnp.float32)
    s1 = jnp.sum(h, axis=0, keepdims=True)        # (1, D)
    s2 = jnp.sum(h * h, axis=0, keepdims=True)    # (1, D) — tile-sized temp only
    st_ref[...] = jnp.concatenate([s1, s2], axis=0)[None, :, :]
    h_ref[...] = h.astype(h_ref.dtype)


def _make_bn_mm_kernel(inv_n, apply_dtype, tile_b, b_true, need_mask, with_stats):
    """BN(prev stats) + LeakyReLU apply, then matmul with the next weight.

    Stats/mean/var/scale/shift in f32; the elementwise apply runs in `apply_dtype`
    (bf16 on v6e/v7x, f32 on v5e).  Optionally emits per-tile partial stats of the
    new activation and masks padded batch rows to zero so downstream stats stay exact.
    """

    def kernel(hp_ref, stp_ref, gb_ref, w_ref, out_ref, *st):
        # Finalize BN statistics from per-tile partials (tiny f32 work per tile).
        stats = jnp.sum(stp_ref[...], axis=0)                 # (2, Dp) f32
        mean = stats[0:1, :] * inv_n
        ex2 = stats[1:2, :] * inv_n
        var = jnp.maximum(ex2 - mean * mean, 0.0)             # clamp f32 cancellation
        scale = gb_ref[0:1, :] * lax.rsqrt(var + BN_EPS)      # rsqrt -> EUP
        shift = gb_ref[1:2, :] - mean * scale

        hp = hp_ref[...]                                      # bf16 tile from HBM
        if apply_dtype == jnp.bfloat16:
            y = hp * scale.astype(jnp.bfloat16) + shift.astype(jnp.bfloat16)
        else:
            y = hp.astype(jnp.float32) * scale + shift
        a = jnp.maximum(y, LRELU_SLOPE * y)                   # LeakyReLU, single vmax

        if need_mask:
            # Zero out padded batch rows so the next layer's statistics stay exact.
            rid = (lax.broadcasted_iota(jnp.int32, (tile_b, 1), 0)
                   + pl.program_id(0) * tile_b)
            a = jnp.where(rid < b_true, a, jnp.zeros_like(a))

        p = jnp.dot(a.astype(jnp.bfloat16), w_ref[...],
                    preferred_element_type=jnp.float32)

        if with_stats:
            s1 = jnp.sum(p, axis=0, keepdims=True)
            s2 = jnp.sum(p * p, axis=0, keepdims=True)
            st[0][...] = jnp.concatenate([s1, s2], axis=0)[None, :, :]

        out_ref[...] = p.astype(out_ref.dtype)

    return kernel


# ----------------------------------------------------------------------------- wrapper
def make_deepsvdd_forward(params, *, tile_b=512, apply_dtype=None):
    """Pre-pack parameters once and return a jitted forward(x) -> z ([B, z_dim] f32)."""
    (w1, b1, g1, be1, w2, b2, g2, be2, w3, b3, g3, be3, w4) = params
    del b1, b2, b3  # cancelled exactly by training-mode BN mean subtraction

    if apply_dtype is None:
        apply_dtype = _default_apply_dtype()

    z_dim = w4.shape[1]
    z_pad = ((z_dim + 127) // 128) * 128

    # One-time parameter packing (hoisted out of the jitted forward).
    w1b = jnp.asarray(w1, jnp.bfloat16)
    w2b = jnp.asarray(w2, jnp.bfloat16)
    w3b = jnp.asarray(w3, jnp.bfloat16)
    w4b = (jnp.zeros((w4.shape[0], z_pad), jnp.float32)
           .at[:, :z_dim].set(w4).astype(jnp.bfloat16))
    gb1 = jnp.concatenate([g1, be1], axis=0).astype(jnp.float32)   # (2, 512)
    gb2 = jnp.concatenate([g2, be2], axis=0).astype(jnp.float32)   # (2, 256)
    gb3 = jnp.concatenate([g3, be3], axis=0).astype(jnp.float32)   # (2, 128)
    packed = (w1b, w2b, w3b, w4b, gb1, gb2, gb3)

    cparams = _compiler_params()
    vmem_full = pl.BlockSpec(memory_space=pltpu.MemorySpace.VMEM)

    def _fwd(x, packed):
        w1b, w2b, w3b, w4b, gb1, gb2, gb3 = packed
        B, in_dim = x.shape
        d1, d2, d3 = w1b.shape[1], w2b.shape[1], w3b.shape[1]

        if B <= tile_b:
            tb, Bp = B, B
        else:
            tb = tile_b
            Bp = ((B + tb - 1) // tb) * tb
        num_bt = Bp // tb
        need_mask = Bp != B
        inv_n = 1.0 / B

        xb = x.astype(jnp.bfloat16)          # wrapper-side cast: half the x DMA
        if need_mask:
            xb = jnp.pad(xb, ((0, Bp - B), (0, 0)))   # zero rows -> stats unaffected

        def row_spec(d):
            return pl.BlockSpec((tb, d), lambda i: (i, 0))

        def stats_spec(d):
            return pl.BlockSpec((1, 2, d), lambda i: (i, 0, 0))

        # Layer 1: matmul + per-tile stats.
        h1, st1 = pl.pallas_call(
            _mm_stats_kernel,
            grid=(num_bt,),
            in_specs=[row_spec(in_dim), vmem_full],
            out_specs=(row_spec(d1), stats_spec(d1)),
            out_shape=(jax.ShapeDtypeStruct((Bp, d1), jnp.bfloat16),
                       jax.ShapeDtypeStruct((num_bt, 2, d1), jnp.float32)),
            compiler_params=cparams,
        )(xb, w1b)

        # Layer 2: BN1 + LeakyReLU + matmul + stats.
        h2, st2 = pl.pallas_call(
            _make_bn_mm_kernel(inv_n, apply_dtype, tb, B, need_mask, True),
            grid=(num_bt,),
            in_specs=[row_spec(d1), vmem_full, vmem_full, vmem_full],
            out_specs=(row_spec(d2), stats_spec(d2)),
            out_shape=(jax.ShapeDtypeStruct((Bp, d2), jnp.bfloat16),
                       jax.ShapeDtypeStruct((num_bt, 2, d2), jnp.float32)),
            compiler_params=cparams,
        )(h1, st1, gb1, w2b)

        # Layer 3: BN2 + LeakyReLU + matmul + stats.
        h3, st3 = pl.pallas_call(
            _make_bn_mm_kernel(inv_n, apply_dtype, tb, B, need_mask, True),
            grid=(num_bt,),
            in_specs=[row_spec(d2), vmem_full, vmem_full, vmem_full],
            out_specs=(row_spec(d3), stats_spec(d3)),
            out_shape=(jax.ShapeDtypeStruct((Bp, d3), jnp.bfloat16),
                       jax.ShapeDtypeStruct((num_bt, 2, d3), jnp.float32)),
            compiler_params=cparams,
        )(h2, st2, gb2, w3b)

        # Layer 4: BN3 + LeakyReLU + bias-free matmul; lane-padded f32 output.
        zp = pl.pallas_call(
            _make_bn_mm_kernel(inv_n, apply_dtype, tb, B, False, False),
            grid=(num_bt,),
            in_specs=[row_spec(d3), vmem_full, vmem_full, vmem_full],
            out_specs=row_spec(z_pad),
            out_shape=jax.ShapeDtypeStruct((Bp, z_pad), jnp.float32),
            compiler_params=cparams,
        )(h3, st3, gb3, w4b)

        return zp[:B, :z_dim]

    fwd = jax.jit(_fwd)
    return lambda x: fwd(x, packed)


# ----------------------------------------------------------------------------- params / refs
def init_params(key, in_dim, z_dim):
    """Synthetic parameters matching the PyTorch module shapes.

    Linear weights pre-transposed to [in_features, out_features]; bias/gamma/beta as
    [1, out_features] for lane-major broadcast.
    """
    dims = [(in_dim, 512), (512, 256), (256, 128)]
    keys = jax.random.split(key, 8)
    params = []
    ki = 0
    for (d_in, d_out) in dims:
        w = jax.random.normal(keys[ki], (d_in, d_out), jnp.float32) * 0.05
        b = jax.random.normal(keys[ki + 1], (1, d_out), jnp.float32) * 0.01
        gamma = jnp.ones((1, d_out), jnp.float32)
        beta = jnp.zeros((1, d_out), jnp.float32)
        params += [w, b, gamma, beta]
        ki += 2
    w4 = jax.random.normal(keys[ki], (128, z_dim), jnp.float32) * 0.05
    params.append(w4)
    return tuple(params)


def reference_forward_f32(x, params):
    """Pure-JAX f32 reference mirroring the PyTorch forward exactly (with biases)."""
    (w1, b1, g1, be1, w2, b2, g2, be2, w3, b3, g3, be3, w4) = params

    def bn_lrelu(h, gamma, beta):
        mean = jnp.mean(h, axis=0, keepdims=True)
        var = jnp.mean((h - mean) ** 2, axis=0, keepdims=True)
        y = (h - mean) * lax.rsqrt(var + BN_EPS) * gamma + beta
        return jnp.where(y >= 0, y, LRELU_SLOPE * y)

    h = bn_lrelu(x @ w1 + b1, g1, be1)
    h = bn_lrelu(h @ w2 + b2, g2, be2)
    h = bn_lrelu(h @ w3 + b3, g3, be3)
    return h @ w4


def reference_pipeline(x, params, apply_dtype):
    """Pure-JAX reference replicating the kernel's exact numerics (bf16 MXU, f32 stats,
    bf16/f32 BN-apply, no pre-BN bias)."""
    (w1, b1, g1, be1, w2, b2, g2, be2, w3, b3, g3, be3, w4) = params
    del b1, b2, b3

    def dot16(a, w):
        return jnp.dot(a.astype(jnp.bfloat16), w.astype(jnp.bfloat16),
                       preferred_element_type=jnp.float32)

    def bn_lrelu(h32, gamma, beta):
        inv_n = 1.0 / h32.shape[0]
        mean = jnp.sum(h32, axis=0, keepdims=True) * inv_n
        ex2 = jnp.sum(h32 * h32, axis=0, keepdims=True) * inv_n
        var = jnp.maximum(ex2 - mean * mean, 0.0)
        scale = gamma * lax.rsqrt(var + BN_EPS)
        shift = beta - mean * scale
        h16 = h32.astype(jnp.bfloat16)     # matches the bf16 HBM round-trip
        if apply_dtype == jnp.bfloat16:
            y = h16 * scale.astype(jnp.bfloat16) + shift.astype(jnp.bfloat16)
        else:
            y = h16.astype(jnp.float32) * scale + shift
        return jnp.maximum(y, LRELU_SLOPE * y)

    h = bn_lrelu(dot16(x, w1), g1, be1)
    h = bn_lrelu(dot16(h, w2), g2, be2)
    h = bn_lrelu(dot16(h, w3), g3, be3)
    return dot16(h, w4)


# ----------------------------------------------------------------------------- main
if __name__ == "__main__":
    key = jax.random.PRNGKey(0)
    kx, kp, kx2 = jax.random.split(key, 3)

    B, IN_DIM, Z_DIM = 8, 64, 32
    x = jax.random.normal(kx, (B, IN_DIM), jnp.float32)
    params = init_params(kp, IN_DIM, Z_DIM)
    apply_dtype = _default_apply_dtype()

    # Single-tile path (batch fits one tile).
    forward = make_deepsvdd_forward(params)
    z = jax.block_until_ready(forward(x))
    assert z.shape == (B, Z_DIM)
    z_ref = reference_pipeline(x, params, apply_dtype)
    assert jnp.allclose(z, z_ref, atol=2e-3, rtol=2e-3), "mismatch vs replicated-math reference"
    z_f32 = reference_forward_f32(x, params)
    assert jnp.allclose(z, z_f32, atol=1e-1, rtol=1e-1), "mismatch vs f32 PyTorch-semantics reference"

    # Multi-tile path: exercises batch tiling, per-tile stats combination and row masking.
    B2 = 70
    x2 = jax.random.normal(kx2, (B2, IN_DIM), jnp.float32)
    forward_tiled = make_deepsvdd_forward(params, tile_b=32)
    z2 = jax.block_until_ready(forward_tiled(x2))
    assert z2.shape == (B2, Z_DIM)
    z2_ref = reference_pipeline(x2, params, apply_dtype)
    assert jnp.allclose(z2, z2_ref, atol=2e-3, rtol=2e-3), "tiled: mismatch vs replicated reference"
    z2_f32 = reference_forward_f32(x2, params)
    assert jnp.allclose(z2, z2_f32, atol=1e-1, rtol=1e-1), "tiled: mismatch vs f32 reference"

    print("KERNEL_OK")
</pallas_src>

<mosaic_0001>
module attributes {stable_mosaic.version = 11 : i64} {
  func.func @kernel(%arg0: i32, %arg1: memref<8x256xbf16, #tpu.memory_space<vmem>>, %arg2: memref<1x2x256xf32, #tpu.memory_space<vmem>>, %arg3: memref<2x256xf32, #tpu.memory_space<vmem>>, %arg4: memref<256x128xbf16, #tpu.memory_space<vmem>>, %arg5: memref<8x128xbf16, #tpu.memory_space<vmem>>, %arg6: memref<1x2x128xf32, #tpu.memory_space<vmem>>) attributes {dimension_semantics = [#tpu.dimension_semantics<parallel>], iteration_bounds = array<i64: 1>, scalar_prefetch = 0 : i64, scratch_operands = 0 : i64, tpu.core_type = #tpu.core_type<tc>, window_params = [{transform_indices = @transform_0, window_bounds = array<i64: 8, 256>}, {pipeline_mode = #tpu.pipeline_mode<synchronous>, transform_indices = @transform_1, window_bounds = array<i64: 1, 2, 256>}, {pipeline_mode = #tpu.pipeline_mode<synchronous>, transform_indices = @transform_2, window_bounds = array<i64: 2, 256>}, {pipeline_mode = #tpu.pipeline_mode<synchronous>, transform_indices = @transform_3, window_bounds = array<i64: 256, 128>}, {transform_indices = @transform_4, window_bounds = array<i64: 8, 128>}, {transform_indices = @transform_5, window_bounds = array<i64: 1, 2, 128>}]} {
    %c0 = arith.constant 0 : index
    %c0_0 = arith.constant 0 : index
    %c0_1 = arith.constant 0 : index
    %0 = vector.load %arg2[%c0, %c0_0, %c0_1] : memref<1x2x256xf32, #tpu.memory_space<vmem>>, vector<1x2x256xf32>
    %cst = arith.constant dense<0.000000e+00> : vector<2x256xf32>
    %1 = vector.multi_reduction <add>, %0, %cst [0] : vector<1x2x256xf32> to vector<2x256xf32>
    %2 = vector.extract_strided_slice %1 {offsets = [0, 0], sizes = [1, 256], strides = [1, 1]} : vector<2x256xf32> to vector<1x256xf32>
    %cst_2 = arith.constant 1.250000e-01 : f32
    %3 = vector.broadcast %cst_2 : f32 to vector<1x256xf32>
    %4 = arith.mulf %2, %3 : vector<1x256xf32>
    %5 = vector.extract_strided_slice %1 {offsets = [1, 0], sizes = [1, 256], strides = [1, 1]} : vector<2x256xf32> to vector<1x256xf32>
    %cst_3 = arith.constant 1.250000e-01 : f32
    %6 = vector.broadcast %cst_3 : f32 to vector<1x256xf32>
    %7 = arith.mulf %5, %6 : vector<1x256xf32>
    %8 = arith.mulf %4, %4 : vector<1x256xf32>
    %9 = arith.subf %7, %8 : vector<1x256xf32>
    %cst_4 = arith.constant 0.000000e+00 : f32
    %10 = vector.broadcast %cst_4 : f32 to vector<1x256xf32>
    %11 = arith.maximumf %9, %10 : vector<1x256xf32>
    %c0_5 = arith.constant 0 : index
    %c0_6 = arith.constant 0 : index
    %12 = vector.load %arg3[%c0_5, %c0_6] : memref<2x256xf32, #tpu.memory_space<vmem>>, vector<1x256xf32>
    %cst_7 = arith.constant 9.99999974E-6 : f32
    %13 = vector.broadcast %cst_7 : f32 to vector<1x256xf32>
    %14 = arith.addf %11, %13 : vector<1x256xf32>
    %15 = math.rsqrt %14 : vector<1x256xf32>
    %16 = arith.mulf %12, %15 : vector<1x256xf32>
    %c1 = arith.constant 1 : index
    %c0_8 = arith.constant 0 : index
    %17 = vector.load %arg3[%c1, %c0_8] : memref<2x256xf32, #tpu.memory_space<vmem>>, vector<1x256xf32>
    %18 = arith.mulf %4, %16 : vector<1x256xf32>
    %19 = arith.subf %17, %18 : vector<1x256xf32>
    %c0_9 = arith.constant 0 : index
    %c0_10 = arith.constant 0 : index
    %20 = vector.load %arg1[%c0_9, %c0_10] : memref<8x256xbf16, #tpu.memory_space<vmem>>, vector<8x256xbf16>
    %21 = arith.truncf %16 : vector<1x256xf32> to vector<1x256xbf16>
    %22 = vector.broadcast %21 : vector<1x256xbf16> to vector<8x256xbf16>
    %23 = arith.mulf %20, %22 : vector<8x256xbf16>
    %24 = arith.truncf %19 : vector<1x256xf32> to vector<1x256xbf16>
    %25 = vector.broadcast %24 : vector<1x256xbf16> to vector<8x256xbf16>
    %26 = arith.addf %23, %25 : vector<8x256xbf16>
    %cst_11 = arith.constant 1.000980e-02 : bf16
    %27 = vector.broadcast %cst_11 : bf16 to vector<8x256xbf16>
    %28 = arith.mulf %27, %26 : vector<8x256xbf16>
    %29 = arith.maximumf %26, %28 : vector<8x256xbf16>
    %c0_12 = arith.constant 0 : index
    %c0_13 = arith.constant 0 : index
    %30 = vector.load %arg4[%c0_12, %c0_13] : memref<256x128xbf16, #tpu.memory_space<vmem>>, vector<256x128xbf16>
    %cst_14 = arith.constant dense<0.000000e+00> : vector<8x128xf32>
    %31 = tpu.matmul %29, %30, %cst_14 {dimension_numbers = #tpu.dot_dimension_numbers<[1], [0], [0], [1], [0, 0, 1, 1], [], []>} : vector<8x256xbf16>, vector<256x128xbf16>, vector<8x128xf32> -> vector<8x128xf32>
    %cst_15 = arith.constant dense<0.000000e+00> : vector<128xf32>
    %32 = vector.multi_reduction <add>, %31, %cst_15 [0] : vector<8x128xf32> to vector<128xf32>
    %33 = vector.shape_cast %32 : vector<128xf32> to vector<1x128xf32>
    %34 = arith.mulf %31, %31 : vector<8x128xf32>
    %cst_16 = arith.constant dense<0.000000e+00> : vector<128xf32>
    %35 = vector.multi_reduction <add>, %34, %cst_16 [0] : vector<8x128xf32> to vector<128xf32>
    %36 = vector.shape_cast %35 : vector<128xf32> to vector<1x128xf32>
    %37 = tpu.concatenate %33, %36 in 0 : vector<1x128xf32>, vector<1x128xf32> -> vector<2x128xf32>
    %38 = vector.shape_cast %37 : vector<2x128xf32> to vector<1x2x128xf32>
    %c0_17 = arith.constant 0 : index
    %c0_18 = arith.constant 0 : index
    %c0_19 = arith.constant 0 : index
    %39 = vector.load %arg6[%c0_17, %c0_18, %c0_19] : memref<1x2x128xf32, #tpu.memory_space<vmem>>, vector<1x2x128xf32>
    tpu.vector_store %arg6[%c0_17, %c0_18, %c0_19], %38 {strides = array<i32>} : memref<1x2x128xf32, #tpu.memory_space<vmem>>, vector<1x2x128xf32>,
    %40 = arith.truncf %31 : vector<8x128xf32> to vector<8x128xbf16>
    %c0_20 = arith.constant 0 : index
    %c0_21 = arith.constant 0 : index
    %41 = vector.load %arg5[%c0_20, %c0_21] : memref<8x128xbf16, #tpu.memory_space<vmem>>, vector<8x128xbf16>
    tpu.vector_store %arg5[%c0_20, %c0_21], %40 {strides = array<i32>} : memref<8x128xbf16, #tpu.memory_space<vmem>>, vector<8x128xbf16>,
    return
  }
  func.func @transform_0(%arg0: i32) -> (i32, i32) {
    %c0_i32 = arith.constant 0 : i32
    %c0_i32_0 = arith.constant 0 : i32
    return %arg0, %c0_i32 : i32, i32
  }
  func.func @transform_1(%arg0: i32) -> (i32, i32, i32) {
    %c0_i32 = arith.constant 0 : i32
    %c0_i32_0 = arith.constant 0 : i32
    %c0_i32_1 = arith.constant 0 : i32
    %c0_i32_2 = arith.constant 0 : i32
    return %c0_i32, %c0_i32_0, %c0_i32_1 : i32, i32, i32
  }
  func.func @transform_2(%arg0: i32) -> (i32, i32) {
    %c0_i32 = arith.constant 0 : i32
    %c0_i32_0 = arith.constant 0 : i32
    %c0_i32_1 = arith.constant 0 : i32
    return %c0_i32, %c0_i32_0 : i32, i32
  }
  func.func @transform_3(%arg0: i32) -> (i32, i32) {
    %c0_i32 = arith.constant 0 : i32
    %c0_i32_0 = arith.constant 0 : i32
    %c0_i32_1 = arith.constant 0 : i32
    return %c0_i32, %c0_i32_0 : i32, i32
  }
  func.func @transform_4(%arg0: i32) -> (i32, i32) {
    %c0_i32 = arith.constant 0 : i32
    %c0_i32_0 = arith.constant 0 : i32
    return %arg0, %c0_i32 : i32, i32
  }
  func.func @transform_5(%arg0: i32) -> (i32, i32, i32) {
    %c0_i32 = arith.constant 0 : i32
    %c0_i32_0 = arith.constant 0 : i32
    %c0_i32_1 = arith.constant 0 : i32
    return %arg0, %c0_i32, %c0_i32_0 : i32, i32, i32
  }
}

module attributes {stable_mosaic.version = 11 : i64} {
  func.func @_mm_stats_kernel(%arg0: i32, %arg1: memref<8x64xbf16, #tpu.memory_space<vmem>>, %arg2: memref<64x512xbf16, #tpu.memory_space<vmem>>, %arg3: memref<8x512xbf16, #tpu.memory_space<vmem>>, %arg4: memref<1x2x512xf32, #tpu.memory_space<vmem>>) attributes {dimension_semantics = [#tpu.dimension_semantics<parallel>], iteration_bounds = array<i64: 1>, scalar_prefetch = 0 : i64, scratch_operands = 0 : i64, tpu.core_type = #tpu.core_type<tc>, window_params = [{transform_indices = @transform_0, window_bounds = array<i64: 8, 64>}, {pipeline_mode = #tpu.pipeline_mode<synchronous>, transform_indices = @transform_1, window_bounds = array<i64: 64, 512>}, {transform_indices = @transform_2, window_bounds = array<i64: 8, 512>}, {transform_indices = @transform_3, window_bounds = array<i64: 1, 2, 512>}]} {
    %c0 = arith.constant 0 : index
    %c0_0 = arith.constant 0 : index
    %0 = vector.load %arg1[%c0, %c0_0] : memref<8x64xbf16, #tpu.memory_space<vmem>>, vector<8x64xbf16>
    %c0_1 = arith.constant 0 : index
    %c0_2 = arith.constant 0 : index
    %1 = vector.load %arg2[%c0_1, %c0_2] : memref<64x512xbf16, #tpu.memory_space<vmem>>, vector<64x512xbf16>
    %cst = arith.constant dense<0.000000e+00> : vector<8x512xf32>
    %2 = tpu.matmul %0, %1, %cst {dimension_numbers = #tpu.dot_dimension_numbers<[1], [0], [0], [1], [0, 0, 1, 1], [], []>} : vector<8x64xbf16>, vector<64x512xbf16>, vector<8x512xf32> -> vector<8x512xf32>
    %cst_3 = arith.constant dense<0.000000e+00> : vector<512xf32>
    %3 = vector.multi_reduction <add>, %2, %cst_3 [0] : vector<8x512xf32> to vector<512xf32>
    %4 = vector.shape_cast %3 : vector<512xf32> to vector<1x512xf32>
    %5 = arith.mulf %2, %2 : vector<8x512xf32>
    %cst_4 = arith.constant dense<0.000000e+00> : vector<512xf32>
    %6 = vector.multi_reduction <add>, %5, %cst_4 [0] : vector<8x512xf32> to vector<512xf32>
    %7 = vector.shape_cast %6 : vector<512xf32> to vector<1x512xf32>
    %8 = tpu.concatenate %4, %7 in 0 : vector<1x512xf32>, vector<1x512xf32> -> vector<2x512xf32>
    %9 = vector.shape_cast %8 : vector<2x512xf32> to vector<1x2x512xf32>
    %c0_5 = arith.constant 0 : index
    %c0_6 = arith.constant 0 : index
    %c0_7 = arith.constant 0 : index
    %10 = vector.load %arg4[%c0_5, %c0_6, %c0_7] : memref<1x2x512xf32, #tpu.memory_space<vmem>>, vector<1x2x512xf32>
    tpu.vector_store %arg4[%c0_5, %c0_6, %c0_7], %9 {strides = array<i32>} : memref<1x2x512xf32, #tpu.memory_space<vmem>>, vector<1x2x512xf32>,
    %11 = arith.truncf %2 : vector<8x512xf32> to vector<8x512xbf16>
    %c0_8 = arith.constant 0 : index
    %c0_9 = arith.constant 0 : index
    %12 = vector.load %arg3[%c0_8, %c0_9] : memref<8x512xbf16, #tpu.memory_space<vmem>>, vector<8x512xbf16>
    tpu.vector_store %arg3[%c0_8, %c0_9], %11 {strides = array<i32>} : memref<8x512xbf16, #tpu.memory_space<vmem>>, vector<8x512xbf16>,
    return
  }
  func.func @transform_0(%arg0: i32) -> (i32, i32) {
    %c0_i32 = arith.constant 0 : i32
    %c0_i32_0 = arith.constant 0 : i32
    return %arg0, %c0_i32 : i32, i32
  }
  func.func @transform_1(%arg0: i32) -> (i32, i32) {
    %c0_i32 = arith.constant 0 : i32
    %c0_i32_0 = arith.constant 0 : i32
    %c0_i32_1 = arith.constant 0 : i32
    return %c0_i32, %c0_i32_0 : i32, i32
  }
  func.func @transform_2(%arg0: i32) -> (i32, i32) {
    %c0_i32 = arith.constant 0 : i32
    %c0_i32_0 = arith.constant 0 : i32
    return %arg0, %c0_i32 : i32, i32
  }
  func.func @transform_3(%arg0: i32) -> (i32, i32, i32) {
    %c0_i32 = arith.constant 0 : i32
    %c0_i32_0 = arith.constant 0 : i32
    %c0_i32_1 = arith.constant 0 : i32
    return %arg0, %c0_i32, %c0_i32_0 : i32, i32, i32
  }
}

module attributes {stable_mosaic.version = 11 : i64} {
  func.func @kernel(%arg0: i32, %arg1: memref<8x512xbf16, #tpu.memory_space<vmem>>, %arg2: memref<1x2x512xf32, #tpu.memory_space<vmem>>, %arg3: memref<2x512xf32, #tpu.memory_space<vmem>>, %arg4: memref<512x256xbf16, #tpu.memory_space<vmem>>, %arg5: memref<8x256xbf16, #tpu.memory_space<vmem>>, %arg6: memref<1x2x256xf32, #tpu.memory_space<vmem>>) attributes {dimension_semantics = [#tpu.dimension_semantics<parallel>], iteration_bounds = array<i64: 1>, scalar_prefetch = 0 : i64, scratch_operands = 0 : i64, tpu.core_type = #tpu.core_type<tc>, window_params = [{transform_indices = @transform_0, window_bounds = array<i64: 8, 512>}, {pipeline_mode = #tpu.pipeline_mode<synchronous>, transform_indices = @transform_1, window_bounds = array<i64: 1, 2, 512>}, {pipeline_mode = #tpu.pipeline_mode<synchronous>, transform_indices = @transform_2, window_bounds = array<i64: 2, 512>}, {pipeline_mode = #tpu.pipeline_mode<synchronous>, transform_indices = @transform_3, window_bounds = array<i64: 512, 256>}, {transform_indices = @transform_4, window_bounds = array<i64: 8, 256>}, {transform_indices = @transform_5, window_bounds = array<i64: 1, 2, 256>}]} {
    %c0 = arith.constant 0 : index
    %c0_0 = arith.constant 0 : index
    %c0_1 = arith.constant 0 : index
    %0 = vector.load %arg2[%c0, %c0_0, %c0_1] : memref<1x2x512xf32, #tpu.memory_space<vmem>>, vector<1x2x512xf32>
    %cst = arith.constant dense<0.000000e+00> : vector<2x512xf32>
    %1 = vector.multi_reduction <add>, %0, %cst [0] : vector<1x2x512xf32> to vector<2x512xf32>
    %2 = vector.extract_strided_slice %1 {offsets = [0, 0], sizes = [1, 512], strides = [1, 1]} : vector<2x512xf32> to vector<1x512xf32>
    %cst_2 = arith.constant 1.250000e-01 : f32
    %3 = vector.broadcast %cst_2 : f32 to vector<1x512xf32>
    %4 = arith.mulf %2, %3 : vector<1x512xf32>
    %5 = vector.extract_strided_slice %1 {offsets = [1, 0], sizes = [1, 512], strides = [1, 1]} : vector<2x512xf32> to vector<1x512xf32>
    %cst_3 = arith.constant 1.250000e-01 : f32
    %6 = vector.broadcast %cst_3 : f32 to vector<1x512xf32>
    %7 = arith.mulf %5, %6 : vector<1x512xf32>
    %8 = arith.mulf %4, %4 : vector<1x512xf32>
    %9 = arith.subf %7, %8 : vector<1x512xf32>
    %cst_4 = arith.constant 0.000000e+00 : f32
    %10 = vector.broadcast %cst_4 : f32 to vector<1x512xf32>
    %11 = arith.maximumf %9, %10 : vector<1x512xf32>
    %c0_5 = arith.constant 0 : index
    %c0_6 = arith.constant 0 : index
    %12 = vector.load %arg3[%c0_5, %c0_6] : memref<2x512xf32, #tpu.memory_space<vmem>>, vector<1x512xf32>
    %cst_7 = arith.constant 9.99999974E-6 : f32
    %13 = vector.broadcast %cst_7 : f32 to vector<1x512xf32>
    %14 = arith.addf %11, %13 : vector<1x512xf32>
    %15 = math.rsqrt %14 : vector<1x512xf32>
    %16 = arith.mulf %12, %15 : vector<1x512xf32>
    %c1 = arith.constant 1 : index
    %c0_8 = arith.constant 0 : index
    %17 = vector.load %arg3[%c1, %c0_8] : memref<2x512xf32, #tpu.memory_space<vmem>>, vector<1x512xf32>
    %18 = arith.mulf %4, %16 : vector<1x512xf32>
    %19 = arith.subf %17, %18 : vector<1x512xf32>
    %c0_9 = arith.constant 0 : index
    %c0_10 = arith.constant 0 : index
    %20 = vector.load %arg1[%c0_9, %c0_10] : memref<8x512xbf16, #tpu.memory_space<vmem>>, vector<8x512xbf16>
    %21 = arith.truncf %16 : vector<1x512xf32> to vector<1x512xbf16>
    %22 = vector.broadcast %21 : vector<1x512xbf16> to vector<8x512xbf16>
    %23 = arith.mulf %20, %22 : vector<8x512xbf16>
    %24 = arith.truncf %19 : vector<1x512xf32> to vector<1x512xbf16>
    %25 = vector.broadcast %24 : vector<1x512xbf16> to vector<8x512xbf16>
    %26 = arith.addf %23, %25 : vector<8x512xbf16>
    %cst_11 = arith.constant 1.000980e-02 : bf16
    %27 = vector.broadcast %cst_11 : bf16 to vector<8x512xbf16>
    %28 = arith.mulf %27, %26 : vector<8x512xbf16>
    %29 = arith.maximumf %26, %28 : vector<8x512xbf16>
    %c0_12 = arith.constant 0 : index
    %c0_13 = arith.constant 0 : index
    %30 = vector.load %arg4[%c0_12, %c0_13] : memref<512x256xbf16, #tpu.memory_space<vmem>>, vector<512x256xbf16>
    %cst_14 = arith.constant dense<0.000000e+00> : vector<8x256xf32>
    %31 = tpu.matmul %29, %30, %cst_14 {dimension_numbers = #tpu.dot_dimension_numbers<[1], [0], [0], [1], [0, 0, 1, 1], [], []>} : vector<8x512xbf16>, vector<512x256xbf16>, vector<8x256xf32> -> vector<8x256xf32>
    %cst_15 = arith.constant dense<0.000000e+00> : vector<256xf32>
    %32 = vector.multi_reduction <add>, %31, %cst_15 [0] : vector<8x256xf32> to vector<256xf32>
    %33 = vector.shape_cast %32 : vector<256xf32> to vector<1x256xf32>
    %34 = arith.mulf %31, %31 : vector<8x256xf32>
    %cst_16 = arith.constant dense<0.000000e+00> : vector<256xf32>
    %35 = vector.multi_reduction <add>, %34, %cst_16 [0] : vector<8x256xf32> to vector<256xf32>
    %36 = vector.shape_cast %35 : vector<256xf32> to vector<1x256xf32>
    %37 = tpu.concatenate %33, %36 in 0 : vector<1x256xf32>, vector<1x256xf32> -> vector<2x256xf32>
    %38 = vector.shape_cast %37 : vector<2x256xf32> to vector<1x2x256xf32>
    %c0_17 = arith.constant 0 : index
    %c0_18 = arith.constant 0 : index
    %c0_19 = arith.constant 0 : index
    %39 = vector.load %arg6[%c0_17, %c0_18, %c0_19] : memref<1x2x256xf32, #tpu.memory_space<vmem>>, vector<1x2x256xf32>
    tpu.vector_store %arg6[%c0_17, %c0_18, %c0_19], %38 {strides = array<i32>} : memref<1x2x256xf32, #tpu.memory_space<vmem>>, vector<1x2x256xf32>,
    %40 = arith.truncf %31 : vector<8x256xf32> to vector<8x256xbf16>
    %c0_20 = arith.constant 0 : index
    %c0_21 = arith.constant 0 : index
    %41 = vector.load %arg5[%c0_20, %c0_21] : memref<8x256xbf16, #tpu.memory_space<vmem>>, vector<8x256xbf16>
    tpu.vector_store %arg5[%c0_20, %c0_21], %40 {strides = array<i32>} : memref<8x256xbf16, #tpu.memory_space<vmem>>, vector<8x256xbf16>,
    return
  }
  func.func @transform_0(%arg0: i32) -> (i32, i32) {
    %c0_i32 = arith.constant 0 : i32
    %c0_i32_0 = arith.constant 0 : i32
    return %arg0, %c0_i32 : i32, i32
  }
  func.func @transform_1(%arg0: i32) -> (i32, i32, i32) {
    %c0_i32 = arith.constant 0 : i32
    %c0_i32_0 = arith.constant 0 : i32
    %c0_i32_1 = arith.constant 0 : i32
    %c0_i32_2 = arith.constant 0 : i32
    return %c0_i32, %c0_i32_0, %c0_i32_1 : i32, i32, i32
  }
  func.func @transform_2(%arg0: i32) -> (i32, i32) {
    %c0_i32 = arith.constant 0 : i32
    %c0_i32_0 = arith.constant 0 : i32
    %c0_i32_1 = arith.constant 0 : i32
    return %c0_i32, %c0_i32_0 : i32, i32
  }
  func.func @transform_3(%arg0: i32) -> (i32, i32) {
    %c0_i32 = arith.constant 0 : i32
    %c0_i32_0 = arith.constant 0 : i32
    %c0_i32_1 = arith.constant 0 : i32
    return %c0_i32, %c0_i32_0 : i32, i32
  }
  func.func @transform_4(%arg0: i32) -> (i32, i32) {
    %c0_i32 = arith.constant 0 : i32
    %c0_i32_0 = arith.constant 0 : i32
    return %arg0, %c0_i32 : i32, i32
  }
  func.func @transform_5(%arg0: i32) -> (i32, i32, i32) {
    %c0_i32 = arith.constant 0 : i32
    %c0_i32_0 = arith.constant 0 : i32
    %c0_i32_1 = arith.constant 0 : i32
    return %arg0, %c0_i32, %c0_i32_0 : i32, i32, i32
  }
}

module attributes {stable_mosaic.version = 11 : i64} {
  func.func @kernel(%arg0: i32, %arg1: memref<8x128xbf16, #tpu.memory_space<vmem>>, %arg2: memref<1x2x128xf32, #tpu.memory_space<vmem>>, %arg3: memref<2x128xf32, #tpu.memory_space<vmem>>, %arg4: memref<128x128xbf16, #tpu.memory_space<vmem>>, %arg5: memref<8x128xf32, #tpu.memory_space<vmem>>) attributes {dimension_semantics = [#tpu.dimension_semantics<parallel>], iteration_bounds = array<i64: 1>, scalar_prefetch = 0 : i64, scratch_operands = 0 : i64, tpu.core_type = #tpu.core_type<tc>, window_params = [{transform_indices = @transform_0, window_bounds = array<i64: 8, 128>}, {pipeline_mode = #tpu.pipeline_mode<synchronous>, transform_indices = @transform_1, window_bounds = array<i64: 1, 2, 128>}, {pipeline_mode = #tpu.pipeline_mode<synchronous>, transform_indices = @transform_2, window_bounds = array<i64: 2, 128>}, {pipeline_mode = #tpu.pipeline_mode<synchronous>, transform_indices = @transform_3, window_bounds = array<i64: 128, 128>}, {transform_indices = @transform_4, window_bounds = array<i64: 8, 128>}]} {
    %c0 = arith.constant 0 : index
    %c0_0 = arith.constant 0 : index
    %c0_1 = arith.constant 0 : index
    %0 = vector.load %arg2[%c0, %c0_0, %c0_1] : memref<1x2x128xf32, #tpu.memory_space<vmem>>, vector<1x2x128xf32>
    %cst = arith.constant dense<0.000000e+00> : vector<2x128xf32>
    %1 = vector.multi_reduction <add>, %0, %cst [0] : vector<1x2x128xf32> to vector<2x128xf32>
    %2 = vector.extract_strided_slice %1 {offsets = [0, 0], sizes = [1, 128], strides = [1, 1]} : vector<2x128xf32> to vector<1x128xf32>
    %cst_2 = arith.constant 1.250000e-01 : f32
    %3 = vector.broadcast %cst_2 : f32 to vector<1x128xf32>
    %4 = arith.mulf %2, %3 : vector<1x128xf32>
    %5 = vector.extract_strided_slice %1 {offsets = [1, 0], sizes = [1, 128], strides = [1, 1]} : vector<2x128xf32> to vector<1x128xf32>
    %cst_3 = arith.constant 1.250000e-01 : f32
    %6 = vector.broadcast %cst_3 : f32 to vector<1x128xf32>
    %7 = arith.mulf %5, %6 : vector<1x128xf32>
    %8 = arith.mulf %4, %4 : vector<1x128xf32>
    %9 = arith.subf %7, %8 : vector<1x128xf32>
    %cst_4 = arith.constant 0.000000e+00 : f32
    %10 = vector.broadcast %cst_4 : f32 to vector<1x128xf32>
    %11 = arith.maximumf %9, %10 : vector<1x128xf32>
    %c0_5 = arith.constant 0 : index
    %c0_6 = arith.constant 0 : index
    %12 = vector.load %arg3[%c0_5, %c0_6] : memref<2x128xf32, #tpu.memory_space<vmem>>, vector<1x128xf32>
    %cst_7 = arith.constant 9.99999974E-6 : f32
    %13 = vector.broadcast %cst_7 : f32 to vector<1x128xf32>
    %14 = arith.addf %11, %13 : vector<1x128xf32>
    %15 = math.rsqrt %14 : vector<1x128xf32>
    %16 = arith.mulf %12, %15 : vector<1x128xf32>
    %c1 = arith.constant 1 : index
    %c0_8 = arith.constant 0 : index
    %17 = vector.load %arg3[%c1, %c0_8] : memref<2x128xf32, #tpu.memory_space<vmem>>, vector<1x128xf32>
    %18 = arith.mulf %4, %16 : vector<1x128xf32>
    %19 = arith.subf %17, %18 : vector<1x128xf32>
    %c0_9 = arith.constant 0 : index
    %c0_10 = arith.constant 0 : index
    %20 = vector.load %arg1[%c0_9, %c0_10] : memref<8x128xbf16, #tpu.memory_space<vmem>>, vector<8x128xbf16>
    %21 = arith.truncf %16 : vector<1x128xf32> to vector<1x128xbf16>
    %22 = vector.broadcast %21 : vector<1x128xbf16> to vector<8x128xbf16>
    %23 = arith.mulf %20, %22 : vector<8x128xbf16>
    %24 = arith.truncf %19 : vector<1x128xf32> to vector<1x128xbf16>
    %25 = vector.broadcast %24 : vector<1x128xbf16> to vector<8x128xbf16>
    %26 = arith.addf %23, %25 : vector<8x128xbf16>
    %cst_11 = arith.constant 1.000980e-02 : bf16
    %27 = vector.broadcast %cst_11 : bf16 to vector<8x128xbf16>
    %28 = arith.mulf %27, %26 : vector<8x128xbf16>
    %29 = arith.maximumf %26, %28 : vector<8x128xbf16>
    %c0_12 = arith.constant 0 : index
    %c0_13 = arith.constant 0 : index
    %30 = vector.load %arg4[%c0_12, %c0_13] : memref<128x128xbf16, #tpu.memory_space<vmem>>, vector<128x128xbf16>
    %cst_14 = arith.constant dense<0.000000e+00> : vector<8x128xf32>
    %31 = tpu.matmul %29, %30, %cst_14 {dimension_numbers = #tpu.dot_dimension_numbers<[1], [0], [0], [1], [0, 0, 1, 1], [], []>} : vector<8x128xbf16>, vector<128x128xbf16>, vector<8x128xf32> -> vector<8x128xf32>
    %c0_15 = arith.constant 0 : index
    %c0_16 = arith.constant 0 : index
    %32 = vector.load %arg5[%c0_15, %c0_16] : memref<8x128xf32, #tpu.memory_space<vmem>>, vector<8x128xf32>
    tpu.vector_store %arg5[%c0_15, %c0_16], %31 {strides = array<i32>} : memref<8x128xf32, #tpu.memory_space<vmem>>, vector<8x128xf32>,
    return
  }
  func.func @transform_0(%arg0: i32) -> (i32, i32) {
    %c0_i32 = arith.constant 0 : i32
    %c0_i32_0 = arith.constant 0 : i32
    return %arg0, %c0_i32 : i32, i32
  }
  func.func @transform_1(%arg0: i32) -> (i32, i32, i32) {
    %c0_i32 = arith.constant 0 : i32
    %c0_i32_0 = arith.constant 0 : i32
    %c0_i32_1 = arith.constant 0 : i32
    %c0_i32_2 = arith.constant 0 : i32
    return %c0_i32, %c0_i32_0, %c0_i32_1 : i32, i32, i32
  }
  func.func @transform_2(%arg0: i32) -> (i32, i32) {
    %c0_i32 = arith.constant 0 : i32
    %c0_i32_0 = arith.constant 0 : i32
    %c0_i32_1 = arith.constant 0 : i32
    return %c0_i32, %c0_i32_0 : i32, i32
  }
  func.func @transform_3(%arg0: i32) -> (i32, i32) {
    %c0_i32 = arith.constant 0 : i32
    %c0_i32_0 = arith.constant 0 : i32
    %c0_i32_1 = arith.constant 0 : i32
    return %c0_i32, %c0_i32_0 : i32, i32
  }
  func.func @transform_4(%arg0: i32) -> (i32, i32) {
    %c0_i32 = arith.constant 0 : i32
    %c0_i32_0 = arith.constant 0 : i32
    return %arg0, %c0_i32 : i32, i32
  }
}

</mosaic_0001>

<llo_original>
// kernel: _fwd.6
$region0: #{_fwd.6}
  #allocation0 [shape = 'u32[]', space=smem, size = 0x4, offset = 0x4, fixed_abs, tag = 'smem constant byte address 0x4 - core index']
  #allocation1 [shape = 'u32[144,128]{1,0:T(1,128)}', space=vmem, size = 0x12000, scoped, tag = 'internal scratch']
  %s0 = inlined_call_operand.vmem [shape: bf16[8,256], index: 0, kind: input, shape index: {}]
  %s1 = inlined_call_operand.vmem [shape: f32[1,2,256], index: 1, kind: input, shape index: {}]
  %s2 = inlined_call_operand.vmem [shape: f32[2,256], index: 2, kind: input, shape index: {}]
  %s3 = inlined_call_operand.vmem [shape: bf16[256,128], index: 3, kind: input, shape index: {}]
  %s4 = inlined_call_operand.vmem [shape: bf16[8,128], index: 4, kind: output, shape index: {0}]
  %s5 = inlined_call_operand.vmem [shape: f32[1,2,128], index: 5, kind: output, shape index: {1}]
  %6 = xla_tuple %s4, %s5
  %s7 = sld [smem:[#allocation0]]
  $region34: #{_fwd.6} parent=0
    _
  %s9 = ssub.s32 1, %s7
  %s10 = scalar_select 0, %s9, %s7
  // Predicated region
  $region2: #{_fwd.6} parent=0 // pred_check
    _
  $region3: #{_fwd.6} parent=0 // pred_check_branch
    %12 = sbr.rel (0) target = $region5
  $region4: #{_fwd.6} parent=0 // pred_region
    _
  $region5: #{_fwd.6} parent=0 // pred_fallthru
    _
  // Predicated region
  $region6: #{_fwd.6} parent=0 // pred_check
    _
  $region7: #{_fwd.6} parent=0 // pred_check_branch
    %14 = sbr.rel (0) target = $region9
  $region8: #{_fwd.6} parent=0 // pred_region
    _
  $region9: #{_fwd.6} parent=0 // pred_fallthru
    _
  // Predicated region
  $region10: #{_fwd.6} parent=0 // pred_check
    _
  $region11: #{_fwd.6} parent=0 // pred_check_branch
    %16 = sbr.rel (0) target = $region13
  $region12: #{_fwd.6} parent=0 // pred_region
    _
  $region13: #{_fwd.6} parent=0 // pred_fallthru
    _
  // Predicated region
  $region14: #{_fwd.6} parent=0 // pred_check
    _
  $region15: #{_fwd.6} parent=0 // pred_check_branch
    %18 = sbr.rel (0) target = $region17
  $region16: #{_fwd.6} parent=0 // pred_region
    _
  $region17: #{_fwd.6} parent=0 // pred_fallthru
    _
  %v21 = vld [vmem:[%s1] sm:$0xf]
  %v22 = vadd.f32 %v21, 0.0
  %v23 = vmul.f32 %v22, 0.125
  %v24 = vmul.f32 %v23, %v23
  %v26 = vrot.slane %v24, 7
  %v28 = vsub.f32 %v23, %v26
  %v29 = vmax.f32 %v28, 0.0
  %v30 = vld [vmem:[%s2] ss:$2 sm:$0x3]
  %v31 = vadd.f32 %v29, 1e-05
  %v32 = vrsqrt.pop %v31
  %v35 = vunpack.c.l.s4 1966171168
  %v36 = vunpack.c.0.s8 %v35
  %v37 = vlaneseq
  %v38 = vshrl.u32 %v37, 7
  %v39 = vsub.s32 %v36, %v38
  %v40 = vrot.slane %v32, %v39
  %v41 = vcombine.high %v40, %v40
  %v43 = vmul.f32 %v30, %v41
  %s44 = scalar_lea.vmem %s2, 1
  %v45 = vld [vmem:[%s44] ss:$2 sm:$0x3]
  %v48 = vunpack.c.l.s4 857870592
  %v49 = vunpack.c.0.s8 %v48
  %v50 = vlaneseq
  %v51 = vshrl.u32 %v50, 7
  %v52 = vsub.s32 %v49, %v51
  %v53 = vrot.slane %v43, %v52
  %v55 = vmul.f32 %v23, %v53
  %v58 = vunpack.c.l.s4 1966171168
  %v59 = vunpack.c.0.s8 %v58
  %v60 = vlaneseq
  %v61 = vshrl.u32 %v60, 7
  %v62 = vsub.s32 %v59, %v61
  %v63 = vrot.slane %v55, %v62
  %v65 = vsub.f32 %v45, %v63
  %v66 = vld [vmem:[%s0] sm:$0xff]
  %v67 = vlaneseq
  %v68 = vshrl.u32 %v67, 7
  %v69 = vsub.s32 0, %v68
  %v70 = vrot.slane %v43, %v69
  %v71 = vlaneseq
  %v72 = vshrl.u32 %v71, 7
  %v73 = vsub.s32 1, %v72
  %v74 = vrot.slane %v43, %v73
  %v77 = vpack.c.bf16 %v70, %v70
  %v78 = vpack.c.bf16 %v74, %v74
  %v80 = vpack.i.b16 %v77, %v77
  %v82 = vlaneseq
  %v83 = vshrl.u32 %v82, 7
  %v84 = vsub.s32 0, %v83
  %v85 = vrot.slane %v80, %v84
  %v87 = vpack.i.b16 %v78, %v78
  %v89 = vlaneseq
  %v90 = vshrl.u32 %v89, 7
  %v91 = vsub.s32 0, %v90
  %v92 = vrot.slane %v87, %v91
  %v95 = vunpack.c.l.b16 %v85
  %v96 = vunpack.c.l.b16 %v92
  %v97 = vpack.c.b16 %v96, %v95
  %v99 = vmul.bf16 %v66, %v97
  %v101 = vlaneseq
  %v102 = vshrl.u32 %v101, 7
  %v103 = vsub.s32 0, %v102
  %v104 = vrot.slane %v65, %v103
  %v105 = vlaneseq
  %v106 = vshrl.u32 %v105, 7
  %v107 = vsub.s32 1, %v106
  %v108 = vrot.slane %v65, %v107
  %v111 = vpack.c.bf16 %v104, %v104
  %v112 = vpack.c.bf16 %v108, %v108
  %v114 = vpack.i.b16 %v111, %v111
  %v116 = vlaneseq
  %v117 = vshrl.u32 %v116, 7
  %v118 = vsub.s32 0, %v117
  %v119 = vrot.slane %v114, %v118
  %v121 = vpack.i.b16 %v112, %v112
  %v123 = vlaneseq
  %v124 = vshrl.u32 %v123, 7
  %v125 = vsub.s32 0, %v124
  %v126 = vrot.slane %v121, %v125
  %v129 = vunpack.c.l.b16 %v119
  %v130 = vunpack.c.l.b16 %v126
  %v131 = vpack.c.b16 %v130, %v129
  %v133 = vadd.bf16 %v99, %v131
  %v134 = vmul.bf16 %v133, 1009007652
  %v135 = vmax.bf16 %v133, %v134
  %v136 = vld [vmem:[%s3] sm:$0xf]
  %v137 = vld [vmem:[%s3 + $0x4] sm:$0xf]
  %v138 = vld [vmem:[%s3 + $0x8] sm:$0xf]
  %v139 = vld [vmem:[%s3 + $0xc] sm:$0xf]
  %v140 = vld [vmem:[%s3 + $0x10] sm:$0xf]
  %v141 = vld [vmem:[%s3 + $0x14] sm:$0xf]
  %v142 = vld [vmem:[%s3 + $0x18] sm:$0xf]
  %v143 = vld [vmem:[%s3 + $0x1c] sm:$0xf]
  %v144 = vld [vmem:[%s3 + $0x20] sm:$0xf]
  %v145 = vld [vmem:[%s3 + $0x24] sm:$0xf]
  %v146 = vld [vmem:[%s3 + $0x28] sm:$0xf]
  %v147 = vld [vmem:[%s3 + $0x2c] sm:$0xf]
  %v148 = vld [vmem:[%s3 + $0x30] sm:$0xf]
  %v149 = vld [vmem:[%s3 + $0x34] sm:$0xf]
  %v150 = vld [vmem:[%s3 + $0x38] sm:$0xf]
  %v151 = vld [vmem:[%s3 + $0x3c] sm:$0xf]
  %v152 = vld [vmem:[%s3 + $0x40] sm:$0xf]
  %v153 = vld [vmem:[%s3 + $0x44] sm:$0xf]
  %v154 = vld [vmem:[%s3 + $0x48] sm:$0xf]
  %v155 = vld [vmem:[%s3 + $0x4c] sm:$0xf]
  %v156 = vld [vmem:[%s3 + $0x50] sm:$0xf]
  %v157 = vld [vmem:[%s3 + $0x54] sm:$0xf]
  %v158 = vld [vmem:[%s3 + $0x58] sm:$0xf]
  %v159 = vld [vmem:[%s3 + $0x5c] sm:$0xf]
  %v160 = vld [vmem:[%s3 + $0x60] sm:$0xf]
  %v161 = vld [vmem:[%s3 + $0x64] sm:$0xf]
  %v162 = vld [vmem:[%s3 + $0x68] sm:$0xf]
  %v163 = vld [vmem:[%s3 + $0x6c] sm:$0xf]
  %v164 = vld [vmem:[%s3 + $0x70] sm:$0xf]
  %v165 = vld [vmem:[%s3 + $0x74] sm:$0xf]
  %v166 = vld [vmem:[%s3 + $0x78] sm:$0xf]
  %v167 = vld [vmem:[%s3 + $0x7c] sm:$0xf]
  %v169 = vunpack.c.l.b16 %v135
  %v170 = vunpack.c.h.b16 %v135
  %v171 = vpack.c.b16 %v169, %v169
  %v172 = vpack.c.b16 %v170, %v170
  %v207 = vunpack.c.l.b16 %v136
  %v208 = vunpack.c.l.b16 %v137
  %v209 = vunpack.c.l.b16 %v138
  %v210 = vunpack.c.l.b16 %v139
  %v211 = vunpack.c.l.b16 %v140
  %v212 = vunpack.c.l.b16 %v141
  %v213 = vunpack.c.l.b16 %v142
  %v214 = vunpack.c.l.b16 %v143
  %v215 = vunpack.c.l.b16 %v144
  %v216 = vunpack.c.l.b16 %v145
  %v217 = vunpack.c.l.b16 %v146
  %v218 = vunpack.c.l.b16 %v147
  %v219 = vunpack.c.l.b16 %v148
  %v220 = vunpack.c.l.b16 %v149
  %v221 = vunpack.c.l.b16 %v150
  %v222 = vunpack.c.l.b16 %v151
  %v223 = vunpack.c.l.b16 %v152
  %v224 = vunpack.c.l.b16 %v153
  %v225 = vunpack.c.l.b16 %v154
  %v226 = vunpack.c.l.b16 %v155
  %v227 = vunpack.c.l.b16 %v156
  %v228 = vunpack.c.l.b16 %v157
  %v229 = vunpack.c.l.b16 %v158
  %v230 = vunpack.c.l.b16 %v159
  %v231 = vunpack.c.l.b16 %v160
  %v232 = vunpack.c.l.b16 %v161
  %v233 = vunpack.c.l.b16 %v162
  %v234 = vunpack.c.l.b16 %v163
  %v235 = vunpack.c.l.b16 %v164
  %v236 = vunpack.c.l.b16 %v165
  %v237 = vunpack.c.l.b16 %v166
  %v238 = vunpack.c.l.b16 %v167
  %v239 = vpack.c.b16 %v208, %v207
  %v240 = vpack.c.b16 %v210, %v209
  %v241 = vpack.c.b16 %v212, %v211
  %v242 = vpack.c.b16 %v214, %v213
  %v243 = vpack.c.b16 %v216, %v215
  %v244 = vpack.c.b16 %v218, %v217
  %v245 = vpack.c.b16 %v220, %v219
  %v246 = vpack.c.b16 %v222, %v221
  %v247 = vpack.c.b16 %v224, %v223
  %v248 = vpack.c.b16 %v226, %v225
  %v249 = vpack.c.b16 %v228, %v227
  %v250 = vpack.c.b16 %v230, %v229
  %v251 = vpack.c.b16 %v232, %v231
  %v252 = vpack.c.b16 %v234, %v233
  %v253 = vpack.c.b16 %v236, %v235
  %v254 = vpack.c.b16 %v238, %v237
  %271 = vmatprep.subr.bf16.mxu0 0
  %272 = vmatpush1.bf16.msra.mxu0 %v239
  %273 = vmatprep.subr.bf16.mxu0 0
  %274 = vmatpush1.bf16.msra.mxu0 %v240
  %275 = vmatprep.subr.bf16.mxu0 0
  %276 = vmatpush1.bf16.msra.mxu0 %v241
  %277 = vmatprep.subr.bf16.mxu0 0
  %278 = vmatpush1.bf16.msra.mxu0 %v242
  %279 = vmatprep.subr.bf16.mxu0 0
  %280 = vmatpush1.bf16.msra.mxu0 %v243
  %281 = vmatprep.subr.bf16.mxu0 0
  %282 = vmatpush1.bf16.msra.mxu0 %v244
  %283 = vmatprep.subr.bf16.mxu0 0
  %284 = vmatpush1.bf16.msra.mxu0 %v245
  %285 = vmatprep.subr.bf16.mxu0 0
  %286 = vmatpush1.bf16.msra.mxu0 %v246
  %287 = vmatprep.subr.bf16.mxu0 0
  %288 = vmatpush1.bf16.msra.mxu0 %v247
  %289 = vmatprep.subr.bf16.mxu0 0
  %290 = vmatpush1.bf16.msra.mxu0 %v248
  %291 = vmatprep.subr.bf16.mxu0 0
  %292 = vmatpush1.bf16.msra.mxu0 %v249
  %293 = vmatprep.subr.bf16.mxu0 0
  %294 = vmatpush1.bf16.msra.mxu0 %v250
  %295 = vmatprep.subr.bf16.mxu0 0
  %296 = vmatpush1.bf16.msra.mxu0 %v251
  %297 = vmatprep.subr.bf16.mxu0 0
  %298 = vmatpush1.bf16.msra.mxu0 %v252
  %299 = vmatprep.subr.bf16.mxu0 0
  %300 = vmatpush1.bf16.msra.mxu0 %v253
  %301 = vmatprep.subr.bf16.mxu0 0
  %302 = vmatpush1.bf16.msra.mxu0 %v254
  %303 = vmatprep.mubr.bf16.mxu0 %v172
  %304 = vmatmul.mubr.bf16.gmra.mrb[0].mxu0 %v171
  %v305 = vpop.f32.mrb[0].mxu0
  %v306 = vadd.f32 0.0, %v305
  %v307 = vpop.f32.mrb[0].mxu0
  %v308 = vpop.f32.mrb[0].mxu0
  %v309 = vpop.f32.mrb[0].mxu0
  %310 = vdwg.mxu0
  %v311 = vrot.slane %v306, 4
  %v312 = vadd.f32 %v306, %v311
  %v313 = vrot.slane %v312, 2
  %v314 = vadd.f32 %v312, %v313
  %v315 = vrot.slane %v314, 1
  %v316 = vadd.f32 %v314, %v315
  %v317 = vmul.f32 %v306, %v306
  %v318 = vrot.slane %v317, 4
  %v319 = vadd.f32 %v317, %v318
  %v320 = vrot.slane %v319, 2
  %v321 = vadd.f32 %v319, %v320
  %v322 = vrot.slane %v321, 1
  %v323 = vadd.f32 %v321, %v322
  %vm324 = vcmask 1040384
  %v325 = vsel %vm324, %v316, %v323
  %326 = vst [vmem:[%s5] sm:$0x3] %v325
  %v327 = vpack.c.bf16 %v306, %v306
  %328 = vst [vmem:[%s4] sm:$0xf] %v327
  // Predicated region
  $region18: #{_fwd.6} parent=0 // pred_check
    _
  $region19: #{_fwd.6} parent=0 // pred_check_branch
    %330 = sbr.rel (0) target = $region21
  $region20: #{_fwd.6} parent=0 // pred_region
    _
  $region21: #{_fwd.6} parent=0 // pred_fallthru
    _
  // Predicated region
  $region22: #{_fwd.6} parent=0 // pred_check
    _
  $region23: #{_fwd.6} parent=0 // pred_check_branch
    %332 = sbr.rel (0) target = $region25
  $region24: #{_fwd.6} parent=0 // pred_region
    _
  $region25: #{_fwd.6} parent=0 // pred_fallthru
    _
  // Predicated region
  $region26: #{_fwd.6} parent=0 // pred_check
    _
  $region27: #{_fwd.6} parent=0 // pred_check_branch
    %334 = sbr.rel (0) target = $region29
  $region28: #{_fwd.6} parent=0 // pred_region
    _
  $region29: #{_fwd.6} parent=0 // pred_fallthru
    _
  // Predicated region
  $region30: #{_fwd.6} parent=0 // pred_check
    _
  $region31: #{_fwd.6} parent=0 // pred_check_branch
    %336 = sbr.rel (0) target = $region33
  $region32: #{_fwd.6} parent=0 // pred_region
    _
  $region33: #{_fwd.6} parent=0 // pred_fallthru
    _

// kernel: _fwd.4
$region0: #{_fwd.4}
  #allocation0 [shape = 'u32[]', space=smem, size = 0x4, offset = 0x4, fixed_abs, tag = 'smem constant byte address 0x4 - core index']
  #allocation1 [shape = 'u32[144,128]{1,0:T(1,128)}', space=vmem, size = 0x12000, scoped, tag = 'internal scratch']
  %s0 = inlined_call_operand.vmem [shape: bf16[8,64], index: 0, kind: input, shape index: {}]
  %s1 = inlined_call_operand.hbm [shape: bf16[64,512], index: 1, kind: input, shape index: {}]
  %s2 = inlined_call_operand.vmem [shape: bf16[8,512], index: 2, kind: output, shape index: {0}]
  %s3 = inlined_call_operand.vmem [shape: f32[1,2,512], index: 3, kind: output, shape index: {1}]
  %4 = xla_tuple %s2, %s3
  %s5 = sld [smem:[#allocation0]]
  $region30: #{_fwd.4} parent=0
    _
  %s7 = ssub.s32 1, %s5
  %s8 = scalar_select 0, %s7, %s5
  $region1: #{_fwd.4} parent=0
    #allocation2 [shape = 'u8[65536]{0}', space=vmem, size = 0x10000, scoped, tag = 'input window, operand 1, single buffered']
    #allocation3 [shape = 's32[1]{0}', space=sflag, size = 0x4, scoped, tag = 'scoped memory for _fwd.4']
    %9 = vsyncpa [#allocation3], 0
    // Predicated region
    $region2: #{_fwd.4} parent=1 // pred_check
      _
    $region3: #{_fwd.4} parent=1 // pred_check_branch
      %11 = sbr.rel (0) target = $region5
    $region4: #{_fwd.4} parent=1 // pred_region
      _
    $region5: #{_fwd.4} parent=1 // pred_fallthru
      _
    // Predicated region
    $region6: #{_fwd.4} parent=1 // pred_check
      _
    $region7: #{_fwd.4} parent=1 // pred_check_branch
      %13 = sbr.rel (0) target = $region9
    $region8: #{_fwd.4} parent=1 // pred_region
      %s15 = ssub.s32 2048, 2048
      %16 = vsyncadd [#allocation3], %s15
      %s17 = sshll.u32 [#allocation2], 4
      %s18 = int_to_ptr.vmem [resolvable:$true] %s17
      %23 = dma.hbm_to_vmem [thread:$0]  %s1, 2048, %s18, [#allocation3], 256, 256, 16
    $region9: #{_fwd.4} parent=1 // pred_fallthru
      _
    // Predicated region
    $region10: #{_fwd.4} parent=1 // pred_check
      _
    $region11: #{_fwd.4} parent=1 // pred_check_branch
      %25 = sbr.rel (0) target = $region13
    $region12: #{_fwd.4} parent=1 // pred_region
      %26 = dma.done [#allocation3], 2048
    $region13: #{_fwd.4} parent=1 // pred_fallthru
      _
    %v28 = vld [vmem:[%s0] sm:$0xf]
    %v29 = vld [vmem:[#allocation2] sm:$0xff]
    %v30 = vld [vmem:[#allocation2 + $0x8] sm:$0xff]
    %v31 = vld [vmem:[#allocation2 + $0x10] sm:$0xff]
    %v32 = vld [vmem:[#allocation2 + $0x18] sm:$0xff]
    %v33 = vld [vmem:[#allocation2 + $0x20] sm:$0xff]
    %v34 = vld [vmem:[#allocation2 + $0x28] sm:$0xff]
    %v35 = vld [vmem:[#allocation2 + $0x30] sm:$0xff]
    %v36 = vld [vmem:[#allocation2 + $0x38] sm:$0xff]
    %v37 = vld [vmem:[#allocation2 + $0x40] sm:$0xff]
    %v38 = vld [vmem:[#allocation2 + $0x48] sm:$0xff]
    %v39 = vld [vmem:[#allocation2 + $0x50] sm:$0xff]
    %v40 = vld [vmem:[#allocation2 + $0x58] sm:$0xff]
    %v41 = vld [vmem:[#allocation2 + $0x60] sm:$0xff]
    %v42 = vld [vmem:[#allocation2 + $0x68] sm:$0xff]
    %v43 = vld [vmem:[#allocation2 + $0x70] sm:$0xff]
    %v44 = vld [vmem:[#allocation2 + $0x78] sm:$0xff]
    %v61 = vunpack.c.l.b16 %v29
    %v62 = vunpack.c.h.b16 %v29
    %v63 = vunpack.c.l.b16 %v30
    %v64 = vunpack.c.h.b16 %v30
    %v65 = vunpack.c.l.b16 %v31
    %v66 = vunpack.c.h.b16 %v31
    %v67 = vunpack.c.l.b16 %v32
    %v68 = vunpack.c.h.b16 %v32
    %v69 = vunpack.c.l.b16 %v33
    %v70 = vunpack.c.h.b16 %v33
    %v71 = vunpack.c.l.b16 %v34
    %v72 = vunpack.c.h.b16 %v34
    %v73 = vunpack.c.l.b16 %v35
    %v74 = vunpack.c.h.b16 %v35
    %v75 = vunpack.c.l.b16 %v36
    %v76 = vunpack.c.h.b16 %v36
    %v77 = vunpack.c.l.b16 %v37
    %v78 = vunpack.c.h.b16 %v37
    %v79 = vunpack.c.l.b16 %v38
    %v80 = vunpack.c.h.b16 %v38
    %v81 = vunpack.c.l.b16 %v39
    %v82 = vunpack.c.h.b16 %v39
    %v83 = vunpack.c.l.b16 %v40
    %v84 = vunpack.c.h.b16 %v40
    %v85 = vunpack.c.l.b16 %v41
    %v86 = vunpack.c.h.b16 %v41
    %v87 = vunpack.c.l.b16 %v42
    %v88 = vunpack.c.h.b16 %v42
    %v89 = vunpack.c.l.b16 %v43
    %v90 = vunpack.c.h.b16 %v43
    %v91 = vunpack.c.l.b16 %v44
    %v92 = vunpack.c.h.b16 %v44
    %v93 = vpack.c.b16 %v65, %v61
    %v94 = vpack.c.b16 %v66, %v62
    %v95 = vpack.c.b16 %v67, %v63
    %v96 = vpack.c.b16 %v68, %v64
    %v97 = vpack.c.b16 %v73, %v69
    %v98 = vpack.c.b16 %v74, %v70
    %v99 = vpack.c.b16 %v75, %v71
    %v100 = vpack.c.b16 %v76, %v72
    %v101 = vpack.c.b16 %v81, %v77
    %v102 = vpack.c.b16 %v82, %v78
    %v103 = vpack.c.b16 %v83, %v79
    %v104 = vpack.c.b16 %v84, %v80
    %v105 = vpack.c.b16 %v89, %v85
    %v106 = vpack.c.b16 %v90, %v86
    %v107 = vpack.c.b16 %v91, %v87
    %v108 = vpack.c.b16 %v92, %v88
    %vm125 = vcmask 523264
    %v127 = vsel %vm125, %v28, 0
    %129 = vmatprep.subr.bf16.mxu0 %v94
    %130 = vmatpush1.bf16.msra.mxu0 %v93
    %131 = vmatprep.subr.bf16.mxu0 %v98
    %132 = vmatpush1.bf16.msra.mxu0 %v97
    %133 = vmatprep.subr.bf16.mxu0 %v102
    %134 = vmatpush1.bf16.msra.mxu0 %v101
    %135 = vmatprep.subr.bf16.mxu0 %v106
    %136 = vmatpush1.bf16.msra.mxu0 %v105
    %137 = vmatprep.subr.bf16.mxu0 0
    %138 = vmatpush1.bf16.msra.mxu0 0
    %139 = vmatprep.subr.bf16.mxu0 0
    %140 = vmatpush1.bf16.msra.mxu0 0
    %141 = vmatprep.subr.bf16.mxu0 0
    %142 = vmatpush1.bf16.msra.mxu0 0
    %143 = vmatprep.subr.bf16.mxu0 0
    %144 = vmatpush1.bf16.msra.mxu0 0
    %145 = vmatprep.subr.bf16.mxu0 0
    %146 = vmatpush1.bf16.msra.mxu0 0
    %147 = vmatprep.subr.bf16.mxu0 0
    %148 = vmatpush1.bf16.msra.mxu0 0
    %149 = vmatprep.subr.bf16.mxu0 0
    %150 = vmatpush1.bf16.msra.mxu0 0
    %151 = vmatprep.subr.bf16.mxu0 0
    %152 = vmatpush1.bf16.msra.mxu0 0
    %153 = vmatprep.subr.bf16.mxu0 0
    %154 = vmatpush1.bf16.msra.mxu0 0
    %155 = vmatprep.subr.bf16.mxu0 0
    %156 = vmatpush1.bf16.msra.mxu0 0
    %157 = vmatprep.subr.bf16.mxu0 0
    %158 = vmatpush1.bf16.msra.mxu0 0
    %159 = vmatprep.subr.bf16.mxu0 0
    %160 = vmatpush1.bf16.msra.mxu0 0
    %161 = vmatprep.mubr.bf16.mxu0 0
    %162 = vmatmul.mubr.bf16.gmra.mrb[0].mxu0 %v127
    %v163 = vpop.f32.mrb[0].mxu0
    %v164 = vadd.f32 0.0, %v163
    %v165 = vpop.f32.mrb[0].mxu0
    %v166 = vadd.f32 0.0, %v165
    %v167 = vpop.f32.mrb[0].mxu0
    %v168 = vpop.f32.mrb[0].mxu0
    %169 = vdwg.mxu0
    %170 = vmatprep.subr.bf16.mxu0 %v96
    %171 = vmatpush1.bf16.msra.mxu0 %v95
    %172 = vmatprep.subr.bf16.mxu0 %v100
    %173 = vmatpush1.bf16.msra.mxu0 %v99
    %174 = vmatprep.subr.bf16.mxu0 %v104
    %175 = vmatpush1.bf16.msra.mxu0 %v103
    %176 = vmatprep.subr.bf16.mxu0 %v108
    %177 = vmatpush1.bf16.msra.mxu0 %v107
    %178 = vmatprep.subr.bf16.mxu0 0
    %179 = vmatpush1.bf16.msra.mxu0 0
    %180 = vmatprep.subr.bf16.mxu0 0
    %181 = vmatpush1.bf16.msra.mxu0 0
    %182 = vmatprep.subr.bf16.mxu0 0
    %183 = vmatpush1.bf16.msra.mxu0 0
    %184 = vmatprep.subr.bf16.mxu0 0
    %185 = vmatpush1.bf16.msra.mxu0 0
    %186 = vmatprep.subr.bf16.mxu0 0
    %187 = vmatpush1.bf16.msra.mxu0 0
    %188 = vmatprep.subr.bf16.mxu0 0
    %189 = vmatpush1.bf16.msra.mxu0 0
    %190 = vmatprep.subr.bf16.mxu0 0
    %191 = vmatpush1.bf16.msra.mxu0 0
    %192 = vmatprep.subr.bf16.mxu0 0
    %193 = vmatpush1.bf16.msra.mxu0 0
    %194 = vmatprep.subr.bf16.mxu0 0
    %195 = vmatpush1.bf16.msra.mxu0 0
    %196 = vmatprep.subr.bf16.mxu0 0
    %197 = vmatpush1.bf16.msra.mxu0 0
    %198 = vmatprep.subr.bf16.mxu0 0
    %199 = vmatpush1.bf16.msra.mxu0 0
    %200 = vmatprep.subr.bf16.mxu0 0
    %201 = vmatpush1.bf16.msra.mxu0 0
    %202 = vmatprep.mubr.bf16.mxu0 0
    %203 = vmatmul.mubr.bf16.gmra.mrb[0].mxu0 %v127
    %v204 = vpop.f32.mrb[0].mxu0
    %v205 = vadd.f32 0.0, %v204
    %v206 = vpop.f32.mrb[0].mxu0
    %v207 = vadd.f32 0.0, %v206
    %v208 = vpop.f32.mrb[0].mxu0
    %v209 = vpop.f32.mrb[0].mxu0
    %210 = vdwg.mxu0
    %v211 = vrot.slane %v164, 4
    %v212 = vadd.f32 %v164, %v211
    %v213 = vrot.slane %v212, 2
    %v214 = vadd.f32 %v212, %v213
    %v215 = vrot.slane %v214, 1
    %v216 = vadd.f32 %v214, %v215
    %v217 = vrot.slane %v166, 4
    %v218 = vadd.f32 %v166, %v217
    %v219 = vrot.slane %v218, 2
    %v220 = vadd.f32 %v218, %v219
    %v221 = vrot.slane %v220, 1
    %v222 = vadd.f32 %v220, %v221
    %v223 = vrot.slane %v205, 4
    %v224 = vadd.f32 %v205, %v223
    %v225 = vrot.slane %v224, 2
    %v226 = vadd.f32 %v224, %v225
    %v227 = vrot.slane %v226, 1
    %v228 = vadd.f32 %v226, %v227
    %v229 = vrot.slane %v207, 4
    %v230 = vadd.f32 %v207, %v229
    %v231 = vrot.slane %v230, 2
    %v232 = vadd.f32 %v230, %v231
    %v233 = vrot.slane %v232, 1
    %v234 = vadd.f32 %v232, %v233
    %v235 = vmul.f32 %v164, %v164
    %v236 = vmul.f32 %v166, %v166
    %v237 = vmul.f32 %v205, %v205
    %v238 = vmul.f32 %v207, %v207
    %v239 = vrot.slane %v235, 4
    %v240 = vadd.f32 %v235, %v239
    %v241 = vrot.slane %v240, 2
    %v242 = vadd.f32 %v240, %v241
    %v243 = vrot.slane %v242, 1
    %v244 = vadd.f32 %v242, %v243
    %v245 = vrot.slane %v236, 4
    %v246 = vadd.f32 %v236, %v245
    %v247 = vrot.slane %v246, 2
    %v248 = vadd.f32 %v246, %v247
    %v249 = vrot.slane %v248, 1
    %v250 = vadd.f32 %v248, %v249
    %v251 = vrot.slane %v237, 4
    %v252 = vadd.f32 %v237, %v251
    %v253 = vrot.slane %v252, 2
    %v254 = vadd.f32 %v252, %v253
    %v255 = vrot.slane %v254, 1
    %v256 = vadd.f32 %v254, %v255
    %v257 = vrot.slane %v238, 4
    %v258 = vadd.f32 %v238, %v257
    %v259 = vrot.slane %v258, 2
    %v260 = vadd.f32 %v258, %v259
    %v261 = vrot.slane %v260, 1
    %v262 = vadd.f32 %v260, %v261
    %vm263 = vcmask 1040384
    %v264 = vsel %vm263, %v216, %v244
    %v265 = vsel %vm263, %v222, %v250
    %v266 = vsel %vm263, %v228, %v256
    %v267 = vsel %vm263, %v234, %v262
    %v272 = vcombine.low %v264, %v265
    %v273 = vcombine.low %v266, %v267
    %v275 = vunpack.c.l.s4 1983009808
    %v276 = vunpack.c.0.s8 %v275
    %v277 = vlaneseq
    %v278 = vshrl.u32 %v277, 7
    %v279 = vsub.s32 %v276, %v278
    %v280 = vrot.slane %v272, %v279
    %v282 = vunpack.c.l.s4 1983009808
    %v283 = vunpack.c.0.s8 %v282
    %v284 = vlaneseq
    %v285 = vshrl.u32 %v284, 7
    %v286 = vsub.s32 %v283, %v285
    %v287 = vrot.slane %v273, %v286
    %v288 = vcombine.low %v280, %v287
    %290 = vst [vmem:[%s3] sm:$0xff] %v288
    %v291 = vpack.c.bf16 %v164, %v164
    %v292 = vpack.c.bf16 %v166, %v166
    %v293 = vpack.c.bf16 %v205, %v205
    %v294 = vpack.c.bf16 %v207, %v207
    %v299 = vunpack.c.l.b16 %v291
    %v300 = vunpack.c.l.b16 %v292
    %v301 = vunpack.c.l.b16 %v293
    %v302 = vunpack.c.l.b16 %v294
    %v303 = vpack.c.b16 %v300, %v299
    %v304 = vpack.c.b16 %v302, %v301
    %307 = vst [vmem:[%s2] sm:$0xff] %v303
    %308 = vst [vmem:[%s2 + $0x8] sm:$0xff] %v304
    // Predicated region
    $region14: #{_fwd.4} parent=1 // pred_check
      _
    $region15: #{_fwd.4} parent=1 // pred_check_branch
      %310 = sbr.rel (0) target = $region17
    $region16: #{_fwd.4} parent=1 // pred_region
      _
    $region17: #{_fwd.4} parent=1 // pred_fallthru
      _
    // Predicated region
    $region18: #{_fwd.4} parent=1 // pred_check
      _
    $region19: #{_fwd.4} parent=1 // pred_check_branch
      %312 = sbr.rel (0) target = $region21
    $region20: #{_fwd.4} parent=1 // pred_region
      _
    $region21: #{_fwd.4} parent=1 // pred_fallthru
      _
    // Predicated region
    $region22: #{_fwd.4} parent=1 // pred_check
      _
    $region23: #{_fwd.4} parent=1 // pred_check_branch
      %314 = sbr.rel (0) target = $region25
    $region24: #{_fwd.4} parent=1 // pred_region
      _
    $region25: #{_fwd.4} parent=1 // pred_fallthru
      _
    // Predicated region
    $region26: #{_fwd.4} parent=1 // pred_check
      _
    $region27: #{_fwd.4} parent=1 // pred_check_branch
      %316 = sbr.rel (0) target = $region29
    $region28: #{_fwd.4} parent=1 // pred_region
      _
    $region29: #{_fwd.4} parent=1 // pred_fallthru
      _
    %317 = vsyncpa [#allocation3], 1

// kernel: _fwd.7
$region0: #{_fwd.7}
  #allocation0 [shape = 'u32[]', space=smem, size = 0x4, offset = 0x4, fixed_abs, tag = 'smem constant byte address 0x4 - core index']
  #allocation1 [shape = 'u32[144,128]{1,0:T(1,128)}', space=vmem, size = 0x12000, scoped, tag = 'internal scratch']
  %s0 = inlined_call_operand.vmem [shape: bf16[8,128], index: 0, kind: input, shape index: {}]
  %s1 = inlined_call_operand.vmem [shape: f32[1,2,128], index: 1, kind: input, shape index: {}]
  %s2 = inlined_call_operand.vmem [shape: f32[2,128], index: 2, kind: input, shape index: {}]
  %s3 = inlined_call_operand.vmem [shape: bf16[128,128], index: 3, kind: input, shape index: {}]
  %s4 = inlined_call_operand.hbm [shape: f32[8,128], index: 4, kind: output, shape index: {}]
  %s5 = sld [smem:[#allocation0]]
  $region26: #{_fwd.7} parent=0
    _
  %s7 = ssub.s32 1, %s5
  %s8 = scalar_select 0, %s7, %s5
  $region1: #{_fwd.7} parent=0
    #allocation2 [shape = 'u8[4096]{0}', space=vmem, size = 0x1000, scoped, tag = 'output window, operand 0, single buffered']
    #allocation3 [shape = 's32[1]{0}', space=sflag, size = 0x4, scoped, tag = 'scoped memory for _fwd.7']
    %9 = vsyncpa [#allocation3], 0
    // Predicated region
    $region2: #{_fwd.7} parent=1 // pred_check
      _
    $region3: #{_fwd.7} parent=1 // pred_check_branch
      %11 = sbr.rel (0) target = $region5
    $region4: #{_fwd.7} parent=1 // pred_region
      _
    $region5: #{_fwd.7} parent=1 // pred_fallthru
      _
    // Predicated region
    $region6: #{_fwd.7} parent=1 // pred_check
      _
    $region7: #{_fwd.7} parent=1 // pred_check_branch
      %13 = sbr.rel (0) target = $region9
    $region8: #{_fwd.7} parent=1 // pred_region
      _
    $region9: #{_fwd.7} parent=1 // pred_fallthru
      _
    // Predicated region
    $region10: #{_fwd.7} parent=1 // pred_check
      _
    $region11: #{_fwd.7} parent=1 // pred_check_branch
      %15 = sbr.rel (0) target = $region13
    $region12: #{_fwd.7} parent=1 // pred_region
      _
    $region13: #{_fwd.7} parent=1 // pred_fallthru
      _
    // Predicated region
    $region14: #{_fwd.7} parent=1 // pred_check
      _
    $region15: #{_fwd.7} parent=1 // pred_check_branch
      %17 = sbr.rel (0) target = $region17
    $region16: #{_fwd.7} parent=1 // pred_region
      _
    $region17: #{_fwd.7} parent=1 // pred_fallthru
      _
    %v20 = vld [vmem:[%s1] sm:$0x3]
    %v21 = vadd.f32 %v20, 0.0
    %v22 = vmul.f32 %v21, 0.125
    %v23 = vmul.f32 %v22, %v22
    %v25 = vrot.slane %v23, 7
    %v27 = vsub.f32 %v22, %v25
    %v28 = vmax.f32 %v27, 0.0
    %v29 = vld [vmem:[%s2] sm:$0x1]
    %v30 = vadd.f32 %v28, 1e-05
    %v31 = vrsqrt.pop %v30
    %v33 = vrot.slane %v31, 1
    %v35 = vmul.f32 %v29, %v33
    %v36 = vld [vmem:[%s2 + $0x1] sm:$0x1]
    %v37 = vmul.f32 %v22, %v35
    %v38 = vsub.f32 %v36, %v37
    %v39 = vld [vmem:[%s0] sm:$0xf]
    %v40 = vpack.c.bf16 %v35, %v35
    %v42 = vpack.i.b16 %v40, %v40
    %v44 = vlaneseq
    %v45 = vshrl.u32 %v44, 7
    %v46 = vsub.s32 0, %v45
    %v47 = vrot.slane %v42, %v46
    %v48 = vmul.bf16 %v39, %v47
    %v49 = vpack.c.bf16 %v38, %v38
    %v51 = vpack.i.b16 %v49, %v49
    %v53 = vlaneseq
    %v54 = vshrl.u32 %v53, 7
    %v55 = vsub.s32 0, %v54
    %v56 = vrot.slane %v51, %v55
    %v57 = vadd.bf16 %v48, %v56
    %v58 = vmul.bf16 %v57, 1009007652
    %v59 = vmax.bf16 %v57, %v58
    %v60 = vld [vmem:[%s3] sm:$0xf]
    %v61 = vld [vmem:[%s3 + $0x4] sm:$0xf]
    %v62 = vld [vmem:[%s3 + $0x8] sm:$0xf]
    %v63 = vld [vmem:[%s3 + $0xc] sm:$0xf]
    %v64 = vld [vmem:[%s3 + $0x10] sm:$0xf]
    %v65 = vld [vmem:[%s3 + $0x14] sm:$0xf]
    %v66 = vld [vmem:[%s3 + $0x18] sm:$0xf]
    %v67 = vld [vmem:[%s3 + $0x1c] sm:$0xf]
    %v68 = vld [vmem:[%s3 + $0x20] sm:$0xf]
    %v69 = vld [vmem:[%s3 + $0x24] sm:$0xf]
    %v70 = vld [vmem:[%s3 + $0x28] sm:$0xf]
    %v71 = vld [vmem:[%s3 + $0x2c] sm:$0xf]
    %v72 = vld [vmem:[%s3 + $0x30] sm:$0xf]
    %v73 = vld [vmem:[%s3 + $0x34] sm:$0xf]
    %v74 = vld [vmem:[%s3 + $0x38] sm:$0xf]
    %v75 = vld [vmem:[%s3 + $0x3c] sm:$0xf]
    %v92 = vunpack.c.l.b16 %v60
    %v93 = vunpack.c.l.b16 %v61
    %v94 = vunpack.c.l.b16 %v62
    %v95 = vunpack.c.l.b16 %v63
    %v96 = vunpack.c.l.b16 %v64
    %v97 = vunpack.c.l.b16 %v65
    %v98 = vunpack.c.l.b16 %v66
    %v99 = vunpack.c.l.b16 %v67
    %v100 = vunpack.c.l.b16 %v68
    %v101 = vunpack.c.l.b16 %v69
    %v102 = vunpack.c.l.b16 %v70
    %v103 = vunpack.c.l.b16 %v71
    %v104 = vunpack.c.l.b16 %v72
    %v105 = vunpack.c.l.b16 %v73
    %v106 = vunpack.c.l.b16 %v74
    %v107 = vunpack.c.l.b16 %v75
    %v108 = vpack.c.b16 %v93, %v92
    %v109 = vpack.c.b16 %v95, %v94
    %v110 = vpack.c.b16 %v97, %v96
    %v111 = vpack.c.b16 %v99, %v98
    %v112 = vpack.c.b16 %v101, %v100
    %v113 = vpack.c.b16 %v103, %v102
    %v114 = vpack.c.b16 %v105, %v104
    %v115 = vpack.c.b16 %v107, %v106
    %124 = vmatprep.subr.bf16.mxu0 0
    %125 = vmatpush1.bf16.msra.mxu0 %v108
    %126 = vmatprep.subr.bf16.mxu0 0
    %127 = vmatpush1.bf16.msra.mxu0 %v109
    %128 = vmatprep.subr.bf16.mxu0 0
    %129 = vmatpush1.bf16.msra.mxu0 %v110
    %130 = vmatprep.subr.bf16.mxu0 0
    %131 = vmatpush1.bf16.msra.mxu0 %v111
    %132 = vmatprep.subr.bf16.mxu0 0
    %133 = vmatpush1.bf16.msra.mxu0 %v112
    %134 = vmatprep.subr.bf16.mxu0 0
    %135 = vmatpush1.bf16.msra.mxu0 %v113
    %136 = vmatprep.subr.bf16.mxu0 0
    %137 = vmatpush1.bf16.msra.mxu0 %v114
    %138 = vmatprep.subr.bf16.mxu0 0
    %139 = vmatpush1.bf16.msra.mxu0 %v115
    %140 = vmatprep.subr.bf16.mxu0 0
    %141 = vmatpush1.bf16.msra.mxu0 0
    %142 = vmatprep.subr.bf16.mxu0 0
    %143 = vmatpush1.bf16.msra.mxu0 0
    %144 = vmatprep.subr.bf16.mxu0 0
    %145 = vmatpush1.bf16.msra.mxu0 0
    %146 = vmatprep.subr.bf16.mxu0 0
    %147 = vmatpush1.bf16.msra.mxu0 0
    %148 = vmatprep.subr.bf16.mxu0 0
    %149 = vmatpush1.bf16.msra.mxu0 0
    %150 = vmatprep.subr.bf16.mxu0 0
    %151 = vmatpush1.bf16.msra.mxu0 0
    %152 = vmatprep.subr.bf16.mxu0 0
    %153 = vmatpush1.bf16.msra.mxu0 0
    %154 = vmatprep.subr.bf16.mxu0 0
    %155 = vmatpush1.bf16.msra.mxu0 0
    %156 = vmatprep.mubr.bf16.mxu0 0
    %157 = vmatmul.mubr.bf16.gmra.mrb[0].mxu0 %v59
    %v158 = vpop.f32.mrb[0].mxu0
    %v159 = vadd.f32 0.0, %v158
    %v160 = vpop.f32.mrb[0].mxu0
    %v161 = vpop.f32.mrb[0].mxu0
    %v162 = vpop.f32.mrb[0].mxu0
    %163 = vdwg.mxu0
    %164 = vst [vmem:[#allocation2] sm:$0xff] %v159
    // Predicated region
    $region18: #{_fwd.7} parent=1 // pred_check
      _
    $region19: #{_fwd.7} parent=1 // pred_check_branch
      %166 = sbr.rel (0) target = $region21
    $region20: #{_fwd.7} parent=1 // pred_region
      %s168 = ssub.s32 128, 128
      %169 = vsyncadd [#allocation3], %s168
      %s171 = sshll.u32 [#allocation2], 4
      %s172 = int_to_ptr.vmem [resolvable:$true] %s171
      %174 = dma.vmem_to_hbm [thread:$0]  %s172, 128, %s4, [#allocation3]
    $region21: #{_fwd.7} parent=1 // pred_fallthru
      _
    // Predicated region
    $region22: #{_fwd.7} parent=1 // pred_check
      _
    $region23: #{_fwd.7} parent=1 // pred_check_branch
      %176 = sbr.rel (0) target = $region25
    $region24: #{_fwd.7} parent=1 // pred_region
      %177 = dma.done [#allocation3], 128
    $region25: #{_fwd.7} parent=1 // pred_fallthru
      _
    %178 = vsyncpa [#allocation3], 1

// kernel: _fwd.5
$region0: #{_fwd.5}
  #allocation0 [shape = 'u32[]', space=smem, size = 0x4, offset = 0x4, fixed_abs, tag = 'smem constant byte address 0x4 - core index']
  #allocation1 [shape = 'u32[144,128]{1,0:T(1,128)}', space=vmem, size = 0x12000, scoped, tag = 'internal scratch']
  %s0 = inlined_call_operand.vmem [shape: bf16[8,512], index: 0, kind: input, shape index: {}]
  %s1 = inlined_call_operand.vmem [shape: f32[1,2,512], index: 1, kind: input, shape index: {}]
  %s2 = inlined_call_operand.vmem [shape: f32[2,512], index: 2, kind: input, shape index: {}]
  %s3 = inlined_call_operand.hbm [shape: bf16[512,256], index: 3, kind: input, shape index: {}]
  %s4 = inlined_call_operand.vmem [shape: bf16[8,256], index: 4, kind: output, shape index: {0}]
  %s5 = inlined_call_operand.vmem [shape: f32[1,2,256], index: 5, kind: output, shape index: {1}]
  %6 = xla_tuple %s4, %s5
  %s7 = sld [smem:[#allocation0]]
  $region38: #{_fwd.5} parent=0
    _
  %s9 = ssub.s32 1, %s7
  %s10 = scalar_select 0, %s9, %s7
  $region1: #{_fwd.5} parent=0
    #allocation2 [shape = 'u8[262144]{0}', space=vmem, size = 0x40000, scoped, tag = 'input window, operand 3, single buffered']
    #allocation3 [shape = 's32[1]{0}', space=sflag, size = 0x4, scoped, tag = 'scoped memory for _fwd.5']
    %11 = vsyncpa [#allocation3], 0
    // Predicated region
    $region2: #{_fwd.5} parent=1 // pred_check
      _
    $region3: #{_fwd.5} parent=1 // pred_check_branch
      %13 = sbr.rel (0) target = $region5
    $region4: #{_fwd.5} parent=1 // pred_region
      _
    $region5: #{_fwd.5} parent=1 // pred_fallthru
      _
    // Predicated region
    $region6: #{_fwd.5} parent=1 // pred_check
      _
    $region7: #{_fwd.5} parent=1 // pred_check_branch
      %15 = sbr.rel (0) target = $region9
    $region8: #{_fwd.5} parent=1 // pred_region
      _
    $region9: #{_fwd.5} parent=1 // pred_fallthru
      _
    // Predicated region
    $region10: #{_fwd.5} parent=1 // pred_check
      _
    $region11: #{_fwd.5} parent=1 // pred_check_branch
      %17 = sbr.rel (0) target = $region13
    $region12: #{_fwd.5} parent=1 // pred_region
      _
    $region13: #{_fwd.5} parent=1 // pred_fallthru
      _
    // Predicated region
    $region14: #{_fwd.5} parent=1 // pred_check
      _
    $region15: #{_fwd.5} parent=1 // pred_check_branch
      %19 = sbr.rel (0) target = $region17
    $region16: #{_fwd.5} parent=1 // pred_region
      %s21 = ssub.s32 8192, 8192
      %22 = vsyncadd [#allocation3], %s21
      %s23 = sshll.u32 [#allocation2], 4
      %s24 = int_to_ptr.vmem [resolvable:$true] %s23
      %29 = dma.hbm_to_vmem [thread:$0]  %s3, 8192, %s24, [#allocation3], 128, 128, 8
    $region17: #{_fwd.5} parent=1 // pred_fallthru
      _
    // Predicated region
    $region18: #{_fwd.5} parent=1 // pred_check
      _
    $region19: #{_fwd.5} parent=1 // pred_check_branch
      %31 = sbr.rel (0) target = $region21
    $region20: #{_fwd.5} parent=1 // pred_region
      %32 = dma.done [#allocation3], 8192
    $region21: #{_fwd.5} parent=1 // pred_fallthru
      _
    %v34 = vld [vmem:[%s1] sm:$0xff]
    %v35 = vadd.f32 %v34, 0.0
    %v36 = vmul.f32 %v35, 0.125
    %v37 = vmul.f32 %v36, %v36
    %v39 = vrot.slane %v37, 7
    %v41 = vsub.f32 %v36, %v39
    %v42 = vmax.f32 %v41, 0.0
    %v43 = vld [vmem:[%s2] ss:$2 sm:$0xf]
    %v44 = vadd.f32 %v42, 1e-05
    %v45 = vrsqrt.pop %v44
    %v48 = vunpack.c.l.s4 1966171168
    %v49 = vunpack.c.0.s8 %v48
    %v50 = vlaneseq
    %v51 = vshrl.u32 %v50, 7
    %v52 = vsub.s32 %v49, %v51
    %v53 = vrot.slane %v45, %v52
    %v54 = vcombine.high %v53, %v53
    %v56 = vmul.f32 %v43, %v54
    %s57 = scalar_lea.vmem %s2, 1
    %v58 = vld [vmem:[%s57] ss:$2 sm:$0xf]
    %v61 = vunpack.c.l.s4 857870592
    %v62 = vunpack.c.0.s8 %v61
    %v63 = vlaneseq
    %v64 = vshrl.u32 %v63, 7
    %v65 = vsub.s32 %v62, %v64
    %v66 = vrot.slane %v56, %v65
    %v68 = vmul.f32 %v36, %v66
    %v71 = vunpack.c.l.s4 1966171168
    %v72 = vunpack.c.0.s8 %v71
    %v73 = vlaneseq
    %v74 = vshrl.u32 %v73, 7
    %v75 = vsub.s32 %v72, %v74
    %v76 = vrot.slane %v68, %v75
    %v78 = vsub.f32 %v58, %v76
    %v79 = vld [vmem:[%s0] sm:$0xff]
    %v80 = vld [vmem:[%s0 + $0x8] sm:$0xff]
    %v81 = vlaneseq
    %v82 = vshrl.u32 %v81, 7
    %v83 = vsub.s32 0, %v82
    %v84 = vrot.slane %v56, %v83
    %v85 = vlaneseq
    %v86 = vshrl.u32 %v85, 7
    %v87 = vsub.s32 1, %v86
    %v88 = vrot.slane %v56, %v87
    %v89 = vlaneseq
    %v90 = vshrl.u32 %v89, 7
    %v91 = vsub.s32 2, %v90
    %v92 = vrot.slane %v56, %v91
    %v93 = vlaneseq
    %v94 = vshrl.u32 %v93, 7
    %v95 = vsub.s32 3, %v94
    %v96 = vrot.slane %v56, %v95
    %v101 = vpack.c.bf16 %v84, %v84
    %v102 = vpack.c.bf16 %v88, %v88
    %v103 = vpack.c.bf16 %v92, %v92
    %v104 = vpack.c.bf16 %v96, %v96
    %v106 = vpack.i.b16 %v101, %v101
    %v108 = vlaneseq
    %v109 = vshrl.u32 %v108, 7
    %v110 = vsub.s32 0, %v109
    %v111 = vrot.slane %v106, %v110
    %v113 = vpack.i.b16 %v102, %v102
    %v115 = vlaneseq
    %v116 = vshrl.u32 %v115, 7
    %v117 = vsub.s32 0, %v116
    %v118 = vrot.slane %v113, %v117
    %v120 = vpack.i.b16 %v103, %v103
    %v122 = vlaneseq
    %v123 = vshrl.u32 %v122, 7
    %v124 = vsub.s32 0, %v123
    %v125 = vrot.slane %v120, %v124
    %v127 = vpack.i.b16 %v104, %v104
    %v129 = vlaneseq
    %v130 = vshrl.u32 %v129, 7
    %v131 = vsub.s32 0, %v130
    %v132 = vrot.slane %v127, %v131
    %v137 = vunpack.c.l.b16 %v111
    %v138 = vunpack.c.l.b16 %v118
    %v139 = vunpack.c.l.b16 %v125
    %v140 = vunpack.c.l.b16 %v132
    %v141 = vpack.c.b16 %v138, %v137
    %v142 = vpack.c.b16 %v140, %v139
    %v145 = vmul.bf16 %v79, %v141
    %v146 = vmul.bf16 %v80, %v142
    %v148 = vlaneseq
    %v149 = vshrl.u32 %v148, 7
    %v150 = vsub.s32 0, %v149
    %v151 = vrot.slane %v78, %v150
    %v152 = vlaneseq
    %v153 = vshrl.u32 %v152, 7
    %v154 = vsub.s32 1, %v153
    %v155 = vrot.slane %v78, %v154
    %v156 = vlaneseq
    %v157 = vshrl.u32 %v156, 7
    %v158 = vsub.s32 2, %v157
    %v159 = vrot.slane %v78, %v158
    %v160 = vlaneseq
    %v161 = vshrl.u32 %v160, 7
    %v162 = vsub.s32 3, %v161
    %v163 = vrot.slane %v78, %v162
    %v168 = vpack.c.bf16 %v151, %v151
    %v169 = vpack.c.bf16 %v155, %v155
    %v170 = vpack.c.bf16 %v159, %v159
    %v171 = vpack.c.bf16 %v163, %v163
    %v173 = vpack.i.b16 %v168, %v168
    %v175 = vlaneseq
    %v176 = vshrl.u32 %v175, 7
    %v177 = vsub.s32 0, %v176
    %v178 = vrot.slane %v173, %v177
    %v180 = vpack.i.b16 %v169, %v169
    %v182 = vlaneseq
    %v183 = vshrl.u32 %v182, 7
    %v184 = vsub.s32 0, %v183
    %v185 = vrot.slane %v180, %v184
    %v187 = vpack.i.b16 %v170, %v170
    %v189 = vlaneseq
    %v190 = vshrl.u32 %v189, 7
    %v191 = vsub.s32 0, %v190
    %v192 = vrot.slane %v187, %v191
    %v194 = vpack.i.b16 %v171, %v171
    %v196 = vlaneseq
    %v197 = vshrl.u32 %v196, 7
    %v198 = vsub.s32 0, %v197
    %v199 = vrot.slane %v194, %v198
    %v204 = vunpack.c.l.b16 %v178
    %v205 = vunpack.c.l.b16 %v185
    %v206 = vunpack.c.l.b16 %v192
    %v207 = vunpack.c.l.b16 %v199
    %v208 = vpack.c.b16 %v205, %v204
    %v209 = vpack.c.b16 %v207, %v206
    %v212 = vadd.bf16 %v145, %v208
    %v213 = vadd.bf16 %v146, %v209
    %v214 = vmul.bf16 %v212, 1009007652
    %v215 = vmul.bf16 %v213, 1009007652
    %v216 = vmax.bf16 %v212, %v214
    %v217 = vmax.bf16 %v213, %v215
    %v218 = vld [vmem:[#allocation2] sm:$0xff]
    %v219 = vld [vmem:[#allocation2 + $0x8] sm:$0xff]
    %v220 = vld [vmem:[#allocation2 + $0x10] sm:$0xff]
    %v221 = vld [vmem:[#allocation2 + $0x18] sm:$0xff]
    %v222 = vld [vmem:[#allocation2 + $0x20] sm:$0xff]
    %v223 = vld [vmem:[#allocation2 + $0x28] sm:$0xff]
    %v224 = vld [vmem:[#allocation2 + $0x30] sm:$0xff]
    %v225 = vld [vmem:[#allocation2 + $0x38] sm:$0xff]
    %v226 = vld [vmem:[#allocation2 + $0x40] sm:$0xff]
    %v227 = vld [vmem:[#allocation2 + $0x48] sm:$0xff]
    %v228 = vld [vmem:[#allocation2 + $0x50] sm:$0xff]
    %v229 = vld [vmem:[#allocation2 + $0x58] sm:$0xff]
    %v230 = vld [vmem:[#allocation2 + $0x60] sm:$0xff]
    %v231 = vld [vmem:[#allocation2 + $0x68] sm:$0xff]
    %v232 = vld [vmem:[#allocation2 + $0x70] sm:$0xff]
    %v233 = vld [vmem:[#allocation2 + $0x78] sm:$0xff]
    %v234 = vld [vmem:[#allocation2 + $0x80] sm:$0xff]
    %v235 = vld [vmem:[#allocation2 + $0x88] sm:$0xff]
    %v236 = vld [vmem:[#allocation2 + $0x90] sm:$0xff]
    %v237 = vld [vmem:[#allocation2 + $0x98] sm:$0xff]
    %v238 = vld [vmem:[#allocation2 + $0xa0] sm:$0xff]
    %v239 = vld [vmem:[#allocation2 + $0xa8] sm:$0xff]
    %v240 = vld [vmem:[#allocation2 + $0xb0] sm:$0xff]
    %v241 = vld [vmem:[#allocation2 + $0xb8] sm:$0xff]
    %v242 = vld [vmem:[#allocation2 + $0xc0] sm:$0xff]
    %v243 = vld [vmem:[#allocation2 + $0xc8] sm:$0xff]
    %v244 = vld [vmem:[#allocation2 + $0xd0] sm:$0xff]
    %v245 = vld [vmem:[#allocation2 + $0xd8] sm:$0xff]
    %v246 = vld [vmem:[#allocation2 + $0xe0] sm:$0xff]
    %v247 = vld [vmem:[#allocation2 + $0xe8] sm:$0xff]
    %v248 = vld [vmem:[#allocation2 + $0xf0] sm:$0xff]
    %v249 = vld [vmem:[#allocation2 + $0xf8] sm:$0xff]
    %v250 = vld [vmem:[#allocation2 + $0x100] sm:$0xff]
    %v251 = vld [vmem:[#allocation2 + $0x108] sm:$0xff]
    %v252 = vld [vmem:[#allocation2 + $0x110] sm:$0xff]
    %v253 = vld [vmem:[#allocation2 + $0x118] sm:$0xff]
    %v254 = vld [vmem:[#allocation2 + $0x120] sm:$0xff]
    %v255 = vld [vmem:[#allocation2 + $0x128] sm:$0xff]
    %v256 = vld [vmem:[#allocation2 + $0x130] sm:$0xff]
    %v257 = vld [vmem:[#allocation2 + $0x138] sm:$0xff]
    %v258 = vld [vmem:[#allocation2 + $0x140] sm:$0xff]
    %v259 = vld [vmem:[#allocation2 + $0x148] sm:$0xff]
    %v260 = vld [vmem:[#allocation2 + $0x150] sm:$0xff]
    %v261 = vld [vmem:[#allocation2 + $0x158] sm:$0xff]
    %v262 = vld [vmem:[#allocation2 + $0x160] sm:$0xff]
    %v263 = vld [vmem:[#allocation2 + $0x168] sm:$0xff]
    %v264 = vld [vmem:[#allocation2 + $0x170] sm:$0xff]
    %v265 = vld [vmem:[#allocation2 + $0x178] sm:$0xff]
    %v266 = vld [vmem:[#allocation2 + $0x180] sm:$0xff]
    %v267 = vld [vmem:[#allocation2 + $0x188] sm:$0xff]
    %v268 = vld [vmem:[#allocation2 + $0x190] sm:$0xff]
    %v269 = vld [vmem:[#allocation2 + $0x198] sm:$0xff]
    %v270 = vld [vmem:[#allocation2 + $0x1a0] sm:$0xff]
    %v271 = vld [vmem:[#allocation2 + $0x1a8] sm:$0xff]
    %v272 = vld [vmem:[#allocation2 + $0x1b0] sm:$0xff]
    %v273 = vld [vmem:[#allocation2 + $0x1b8] sm:$0xff]
    %v274 = vld [vmem:[#allocation2 + $0x1c0] sm:$0xff]
    %v275 = vld [vmem:[#allocation2 + $0x1c8] sm:$0xff]
    %v276 = vld [vmem:[#allocation2 + $0x1d0] sm:$0xff]
    %v277 = vld [vmem:[#allocation2 + $0x1d8] sm:$0xff]
    %v278 = vld [vmem:[#allocation2 + $0x1e0] sm:$0xff]
    %v279 = vld [vmem:[#allocation2 + $0x1e8] sm:$0xff]
    %v280 = vld [vmem:[#allocation2 + $0x1f0] sm:$0xff]
    %v281 = vld [vmem:[#allocation2 + $0x1f8] sm:$0xff]
    %v284 = vunpack.c.l.b16 %v216
    %v285 = vunpack.c.h.b16 %v216
    %v286 = vunpack.c.l.b16 %v217
    %v287 = vunpack.c.h.b16 %v217
    %v288 = vpack.c.b16 %v284, %v284
    %v289 = vpack.c.b16 %v285, %v285
    %v290 = vpack.c.b16 %v286, %v286
    %v291 = vpack.c.b16 %v287, %v287
    %v360 = vunpack.c.l.b16 %v218
    %v361 = vunpack.c.h.b16 %v218
    %v362 = vunpack.c.l.b16 %v219
    %v363 = vunpack.c.h.b16 %v219
    %v364 = vunpack.c.l.b16 %v220
    %v365 = vunpack.c.h.b16 %v220
    %v366 = vunpack.c.l.b16 %v221
    %v367 = vunpack.c.h.b16 %v221
    %v368 = vunpack.c.l.b16 %v222
    %v369 = vunpack.c.h.b16 %v222
    %v370 = vunpack.c.l.b16 %v223
    %v371 = vunpack.c.h.b16 %v223
    %v372 = vunpack.c.l.b16 %v224
    %v373 = vunpack.c.h.b16 %v224
    %v374 = vunpack.c.l.b16 %v225
    %v375 = vunpack.c.h.b16 %v225
    %v376 = vunpack.c.l.b16 %v226
    %v377 = vunpack.c.h.b16 %v226
    %v378 = vunpack.c.l.b16 %v227
    %v379 = vunpack.c.h.b16 %v227
    %v380 = vunpack.c.l.b16 %v228
    %v381 = vunpack.c.h.b16 %v228
    %v382 = vunpack.c.l.b16 %v229
    %v383 = vunpack.c.h.b16 %v229
    %v384 = vunpack.c.l.b16 %v230
    %v385 = vunpack.c.h.b16 %v230
    %v386 = vunpack.c.l.b16 %v231
    %v387 = vunpack.c.h.b16 %v231
    %v388 = vunpack.c.l.b16 %v232
    %v389 = vunpack.c.h.b16 %v232
    %v390 = vunpack.c.l.b16 %v233
    %v391 = vunpack.c.h.b16 %v233
    %v392 = vunpack.c.l.b16 %v234
    %v393 = vunpack.c.h.b16 %v234
    %v394 = vunpack.c.l.b16 %v235
    %v395 = vunpack.c.h.b16 %v235
    %v396 = vunpack.c.l.b16 %v236
    %v397 = vunpack.c.h.b16 %v236
    %v398 = vunpack.c.l.b16 %v237
    %v399 = vunpack.c.h.b16 %v237
    %v400 = vunpack.c.l.b16 %v238
    %v401 = vunpack.c.h.b16 %v238
    %v402 = vunpack.c.l.b16 %v239
    %v403 = vunpack.c.h.b16 %v239
    %v404 = vunpack.c.l.b16 %v240
    %v405 = vunpack.c.h.b16 %v240
    %v406 = vunpack.c.l.b16 %v241
    %v407 = vunpack.c.h.b16 %v241
    %v408 = vunpack.c.l.b16 %v242
    %v409 = vunpack.c.h.b16 %v242
    %v410 = vunpack.c.l.b16 %v243
    %v411 = vunpack.c.h.b16 %v243
    %v412 = vunpack.c.l.b16 %v244
    %v413 = vunpack.c.h.b16 %v244
    %v414 = vunpack.c.l.b16 %v245
    %v415 = vunpack.c.h.b16 %v245
    %v416 = vunpack.c.l.b16 %v246
    %v417 = vunpack.c.h.b16 %v246
    %v418 = vunpack.c.l.b16 %v247
    %v419 = vunpack.c.h.b16 %v247
    %v420 = vunpack.c.l.b16 %v248
    %v421 = vunpack.c.h.b16 %v248
    %v422 = vunpack.c.l.b16 %v249
    %v423 = vunpack.c.h.b16 %v249
    %v424 = vunpack.c.l.b16 %v250
    %v425 = vunpack.c.h.b16 %v250
    %v426 = vunpack.c.l.b16 %v251
    %v427 = vunpack.c.h.b16 %v251
    %v428 = vunpack.c.l.b16 %v252
    %v429 = vunpack.c.h.b16 %v252
    %v430 = vunpack.c.l.b16 %v253
    %v431 = vunpack.c.h.b16 %v253
    %v432 = vunpack.c.l.b16 %v254
    %v433 = vunpack.c.h.b16 %v254
    %v434 = vunpack.c.l.b16 %v255
    %v435 = vunpack.c.h.b16 %v255
    %v436 = vunpack.c.l.b16 %v256
    %v437 = vunpack.c.h.b16 %v256
    %v438 = vunpack.c.l.b16 %v257
    %v439 = vunpack.c.h.b16 %v257
    %v440 = vunpack.c.l.b16 %v258
    %v441 = vunpack.c.h.b16 %v258
    %v442 = vunpack.c.l.b16 %v259
    %v443 = vunpack.c.h.b16 %v259
    %v444 = vunpack.c.l.b16 %v260
    %v445 = vunpack.c.h.b16 %v260
    %v446 = vunpack.c.l.b16 %v261
    %v447 = vunpack.c.h.b16 %v261
    %v448 = vunpack.c.l.b16 %v262
    %v449 = vunpack.c.h.b16 %v262
    %v450 = vunpack.c.l.b16 %v263
    %v451 = vunpack.c.h.b16 %v263
    %v452 = vunpack.c.l.b16 %v264
    %v453 = vunpack.c.h.b16 %v264
    %v454 = vunpack.c.l.b16 %v265
    %v455 = vunpack.c.h.b16 %v265
    %v456 = vunpack.c.l.b16 %v266
    %v457 = vunpack.c.h.b16 %v266
    %v458 = vunpack.c.l.b16 %v267
    %v459 = vunpack.c.h.b16 %v267
    %v460 = vunpack.c.l.b16 %v268
    %v461 = vunpack.c.h.b16 %v268
    %v462 = vunpack.c.l.b16 %v269
    %v463 = vunpack.c.h.b16 %v269
    %v464 = vunpack.c.l.b16 %v270
    %v465 = vunpack.c.h.b16 %v270
    %v466 = vunpack.c.l.b16 %v271
    %v467 = vunpack.c.h.b16 %v271
    %v468 = vunpack.c.l.b16 %v272
    %v469 = vunpack.c.h.b16 %v272
    %v470 = vunpack.c.l.b16 %v273
    %v471 = vunpack.c.h.b16 %v273
    %v472 = vunpack.c.l.b16 %v274
    %v473 = vunpack.c.h.b16 %v274
    %v474 = vunpack.c.l.b16 %v275
    %v475 = vunpack.c.h.b16 %v275
    %v476 = vunpack.c.l.b16 %v276
    %v477 = vunpack.c.h.b16 %v276
    %v478 = vunpack.c.l.b16 %v277
    %v479 = vunpack.c.h.b16 %v277
    %v480 = vunpack.c.l.b16 %v278
    %v481 = vunpack.c.h.b16 %v278
    %v482 = vunpack.c.l.b16 %v279
    %v483 = vunpack.c.h.b16 %v279
    %v484 = vunpack.c.l.b16 %v280
    %v485 = vunpack.c.h.b16 %v280
    %v486 = vunpack.c.l.b16 %v281
    %v487 = vunpack.c.h.b16 %v281
    %v488 = vpack.c.b16 %v362, %v360
    %v489 = vpack.c.b16 %v363, %v361
    %v490 = vpack.c.b16 %v366, %v364
    %v491 = vpack.c.b16 %v367, %v365
    %v492 = vpack.c.b16 %v370, %v368
    %v493 = vpack.c.b16 %v371, %v369
    %v494 = vpack.c.b16 %v374, %v372
    %v495 = vpack.c.b16 %v375, %v373
    %v496 = vpack.c.b16 %v378, %v376
    %v497 = vpack.c.b16 %v379, %v377
    %v498 = vpack.c.b16 %v382, %v380
    %v499 = vpack.c.b16 %v383, %v381
    %v500 = vpack.c.b16 %v386, %v384
    %v501 = vpack.c.b16 %v387, %v385
    %v502 = vpack.c.b16 %v390, %v388
    %v503 = vpack.c.b16 %v391, %v389
    %v504 = vpack.c.b16 %v394, %v392
    %v505 = vpack.c.b16 %v395, %v393
    %v506 = vpack.c.b16 %v398, %v396
    %v507 = vpack.c.b16 %v399, %v397
    %v508 = vpack.c.b16 %v402, %v400
    %v509 = vpack.c.b16 %v403, %v401
    %v510 = vpack.c.b16 %v406, %v404
    %v511 = vpack.c.b16 %v407, %v405
    %v512 = vpack.c.b16 %v410, %v408
    %v513 = vpack.c.b16 %v411, %v409
    %v514 = vpack.c.b16 %v414, %v412
    %v515 = vpack.c.b16 %v415, %v413
    %v516 = vpack.c.b16 %v418, %v416
    %v517 = vpack.c.b16 %v419, %v417
    %v518 = vpack.c.b16 %v422, %v420
    %v519 = vpack.c.b16 %v423, %v421
    %v520 = vpack.c.b16 %v426, %v424
    %v521 = vpack.c.b16 %v427, %v425
    %v522 = vpack.c.b16 %v430, %v428
    %v523 = vpack.c.b16 %v431, %v429
    %v524 = vpack.c.b16 %v434, %v432
    %v525 = vpack.c.b16 %v435, %v433
    %v526 = vpack.c.b16 %v438, %v436
    %v527 = vpack.c.b16 %v439, %v437
    %v528 = vpack.c.b16 %v442, %v440
    %v529 = vpack.c.b16 %v443, %v441
    %v530 = vpack.c.b16 %v446, %v444
    %v531 = vpack.c.b16 %v447, %v445
    %v532 = vpack.c.b16 %v450, %v448
    %v533 = vpack.c.b16 %v451, %v449
    %v534 = vpack.c.b16 %v454, %v452
    %v535 = vpack.c.b16 %v455, %v453
    %v536 = vpack.c.b16 %v458, %v456
    %v537 = vpack.c.b16 %v459, %v457
    %v538 = vpack.c.b16 %v462, %v460
    %v539 = vpack.c.b16 %v463, %v461
    %v540 = vpack.c.b16 %v466, %v464
    %v541 = vpack.c.b16 %v467, %v465
    %v542 = vpack.c.b16 %v470, %v468
    %v543 = vpack.c.b16 %v471, %v469
    %v544 = vpack.c.b16 %v474, %v472
    %v545 = vpack.c.b16 %v475, %v473
    %v546 = vpack.c.b16 %v478, %v476
    %v547 = vpack.c.b16 %v479, %v477
    %v548 = vpack.c.b16 %v482, %v480
    %v549 = vpack.c.b16 %v483, %v481
    %v550 = vpack.c.b16 %v486, %v484
    %v551 = vpack.c.b16 %v487, %v485
    %616 = vmatprep.subr.bf16.mxu0 %v489
    %617 = vmatpush1.bf16.msra.mxu0 %v488
    %618 = vmatprep.subr.bf16.mxu0 %v491
    %619 = vmatpush1.bf16.msra.mxu0 %v490
    %620 = vmatprep.subr.bf16.mxu0 %v493
    %621 = vmatpush1.bf16.msra.mxu0 %v492
    %622 = vmatprep.subr.bf16.mxu0 %v495
    %623 = vmatpush1.bf16.msra.mxu0 %v494
    %624 = vmatprep.subr.bf16.mxu0 %v497
    %625 = vmatpush1.bf16.msra.mxu0 %v496
    %626 = vmatprep.subr.bf16.mxu0 %v499
    %627 = vmatpush1.bf16.msra.mxu0 %v498
    %628 = vmatprep.subr.bf16.mxu0 %v501
    %629 = vmatpush1.bf16.msra.mxu0 %v500
    %630 = vmatprep.subr.bf16.mxu0 %v503
    %631 = vmatpush1.bf16.msra.mxu0 %v502
    %632 = vmatprep.subr.bf16.mxu0 %v505
    %633 = vmatpush1.bf16.msra.mxu0 %v504
    %634 = vmatprep.subr.bf16.mxu0 %v507
    %635 = vmatpush1.bf16.msra.mxu0 %v506
    %636 = vmatprep.subr.bf16.mxu0 %v509
    %637 = vmatpush1.bf16.msra.mxu0 %v508
    %638 = vmatprep.subr.bf16.mxu0 %v511
    %639 = vmatpush1.bf16.msra.mxu0 %v510
    %640 = vmatprep.subr.bf16.mxu0 %v513
    %641 = vmatpush1.bf16.msra.mxu0 %v512
    %642 = vmatprep.subr.bf16.mxu0 %v515
    %643 = vmatpush1.bf16.msra.mxu0 %v514
    %644 = vmatprep.subr.bf16.mxu0 %v517
    %645 = vmatpush1.bf16.msra.mxu0 %v516
    %646 = vmatprep.subr.bf16.mxu0 %v519
    %647 = vmatpush1.bf16.msra.mxu0 %v518
    %648 = vmatprep.mubr.bf16.mxu0 %v289
    %649 = vmatmul.mubr.bf16.gmra.mrb[0].mxu0 %v288
    %v650 = vpop.f32.mrb[0].mxu0
    %v651 = vadd.f32 0.0, %v650
    %v652 = vpop.f32.mrb[0].mxu0
    %v653 = vadd.f32 0.0, %v652
    %v654 = vpop.f32.mrb[0].mxu0
    %v655 = vpop.f32.mrb[0].mxu0
    %656 = vdwg.mxu0
    %657 = vmatprep.subr.bf16.mxu0 %v521
    %658 = vmatpush1.bf16.msra.mxu0 %v520
    %659 = vmatprep.subr.bf16.mxu0 %v523
    %660 = vmatpush1.bf16.msra.mxu0 %v522
    %661 = vmatprep.subr.bf16.mxu0 %v525
    %662 = vmatpush1.bf16.msra.mxu0 %v524
    %663 = vmatprep.subr.bf16.mxu0 %v527
    %664 = vmatpush1.bf16.msra.mxu0 %v526
    %665 = vmatprep.subr.bf16.mxu0 %v529
    %666 = vmatpush1.bf16.msra.mxu0 %v528
    %667 = vmatprep.subr.bf16.mxu0 %v531
    %668 = vmatpush1.bf16.msra.mxu0 %v530
    %669 = vmatprep.subr.bf16.mxu0 %v533
    %670 = vmatpush1.bf16.msra.mxu0 %v532
    %671 = vmatprep.subr.bf16.mxu0 %v535
    %672 = vmatpush1.bf16.msra.mxu0 %v534
    %673 = vmatprep.subr.bf16.mxu0 %v537
    %674 = vmatpush1.bf16.msra.mxu0 %v536
    %675 = vmatprep.subr.bf16.mxu0 %v539
    %676 = vmatpush1.bf16.msra.mxu0 %v538
    %677 = vmatprep.subr.bf16.mxu0 %v541
    %678 = vmatpush1.bf16.msra.mxu0 %v540
    %679 = vmatprep.subr.bf16.mxu0 %v543
    %680 = vmatpush1.bf16.msra.mxu0 %v542
    %681 = vmatprep.subr.bf16.mxu0 %v545
    %682 = vmatpush1.bf16.msra.mxu0 %v544
    %683 = vmatprep.subr.bf16.mxu0 %v547
    %684 = vmatpush1.bf16.msra.mxu0 %v546
    %685 = vmatprep.subr.bf16.mxu0 %v549
    %686 = vmatpush1.bf16.msra.mxu0 %v548
    %687 = vmatprep.subr.bf16.mxu0 %v551
    %688 = vmatpush1.bf16.msra.mxu0 %v550
    %689 = vmatprep.mubr.bf16.mxu0 %v291
    %690 = vmatmul.mubr.bf16.gmra.mrb[0].mxu0 %v290
    %v691 = vpop.f32.mrb[0].mxu0
    %v692 = vadd.f32 %v651, %v691
    %v693 = vpop.f32.mrb[0].mxu0
    %v694 = vadd.f32 %v653, %v693
    %v695 = vpop.f32.mrb[0].mxu0
    %v696 = vpop.f32.mrb[0].mxu0
    %697 = vdwg.mxu0
    %v698 = vrot.slane %v692, 4
    %v699 = vadd.f32 %v692, %v698
    %v700 = vrot.slane %v699, 2
    %v701 = vadd.f32 %v699, %v700
    %v702 = vrot.slane %v701, 1
    %v703 = vadd.f32 %v701, %v702
    %v704 = vrot.slane %v694, 4
    %v705 = vadd.f32 %v694, %v704
    %v706 = vrot.slane %v705, 2
    %v707 = vadd.f32 %v705, %v706
    %v708 = vrot.slane %v707, 1
    %v709 = vadd.f32 %v707, %v708
    %v710 = vmul.f32 %v692, %v692
    %v711 = vmul.f32 %v694, %v694
    %v712 = vrot.slane %v710, 4
    %v713 = vadd.f32 %v710, %v712
    %v714 = vrot.slane %v713, 2
    %v715 = vadd.f32 %v713, %v714
    %v716 = vrot.slane %v715, 1
    %v717 = vadd.f32 %v715, %v716
    %v718 = vrot.slane %v711, 4
    %v719 = vadd.f32 %v711, %v718
    %v720 = vrot.slane %v719, 2
    %v721 = vadd.f32 %v719, %v720
    %v722 = vrot.slane %v721, 1
    %v723 = vadd.f32 %v721, %v722
    %vm724 = vcmask 1040384
    %v725 = vsel %vm724, %v703, %v717
    %v726 = vsel %vm724, %v709, %v723
    %v729 = vcombine.low %v725, %v726
    %v731 = vunpack.c.l.s4 1983009808
    %v732 = vunpack.c.0.s8 %v731
    %v733 = vlaneseq
    %v734 = vshrl.u32 %v733, 7
    %v735 = vsub.s32 %v732, %v734
    %v736 = vrot.slane %v729, %v735
    %738 = vst [vmem:[%s5] sm:$0xf] %v736
    %v739 = vpack.c.bf16 %v692, %v692
    %v740 = vpack.c.bf16 %v694, %v694
    %v743 = vunpack.c.l.b16 %v739
    %v744 = vunpack.c.l.b16 %v740
    %v745 = vpack.c.b16 %v744, %v743
    %747 = vst [vmem:[%s4] sm:$0xff] %v745
    // Predicated region
    $region22: #{_fwd.5} parent=1 // pred_check
      _
    $region23: #{_fwd.5} parent=1 // pred_check_branch
      %749 = sbr.rel (0) target = $region25
    $region24: #{_fwd.5} parent=1 // pred_region
      _
    $region25: #{_fwd.5} parent=1 // pred_fallthru
      _
    // Predicated region
    $region26: #{_fwd.5} parent=1 // pred_check
      _
    $region27: #{_fwd.5} parent=1 // pred_check_branch
      %751 = sbr.rel (0) target = $region29
    $region28: #{_fwd.5} parent=1 // pred_region
      _
    $region29: #{_fwd.5} parent=1 // pred_fallthru
      _
    // Predicated region
    $region30: #{_fwd.5} parent=1 // pred_check
      _
    $region31: #{_fwd.5} parent=1 // pred_check_branch
      %753 = sbr.rel (0) target = $region33
    $region32: #{_fwd.5} parent=1 // pred_region
      _
    $region33: #{_fwd.5} parent=1 // pred_fallthru
      _
    // Predicated region
    $region34: #{_fwd.5} parent=1 // pred_check
      _
    $region35: #{_fwd.5} parent=1 // pred_check_branch
      %755 = sbr.rel (0) target = $region37
    $region36: #{_fwd.5} parent=1 // pred_region
      _
    $region37: #{_fwd.5} parent=1 // pred_fallthru
      _
    %756 = vsyncpa [#allocation3], 1

</llo_original>
